<compile_context>
chip_gen: v5e
topology: v5e:2x2
jax: 0.10.0
libtpu: 0.0.40
codegen_flags: <defaults>
</compile_context>

<pallas_src>
import math

import jax
import jax.numpy as jnp
from jax import lax
from jax.experimental import pallas as pl
from jax.experimental.pallas import tpu as pltpu

_SQRT2 = math.sqrt(2.0)


def _gelu_exact(x):
    # Exact GELU (erf based), matching torch.nn.functional.gelu default.
    return 0.5 * x * (1.0 + lax.erf(x / _SQRT2))


def recursive_self_model_kernel(
    x_ref,      # (1, T*TB, 2D)  time-major rows [x_t | x_{T-1-t}], one batch tile
    lstm_ref,   # (3D+1, 4D)     rows: [W_ih (2D) | W_hh (D) | bias (1)], gate order i|f|o|g
    pw_ref,     # (D, (K+1)*D)   cols: [dp_w_0 | .. | dp_w_{K-1} | out_w / K]
    pb_ref,     # (K+3, D)       rows: dp_b_0..dp_b_{K-1}, out_b, ln_g, ln_b
    o_ref,      # (TB, D)        unified_self for this batch tile
):
    _, TBT, two_d = x_ref.shape
    D = two_d // 2
    TB = o_ref.shape[0]
    T = TBT // TB
    K = pw_ref.shape[1] // D - 1          # max_depth

    wih = lstm_ref[0:2 * D, :]            # (2D, 4D)
    whh = lstm_ref[2 * D:3 * D, :]        # (D, 4D)
    bias = lstm_ref[3 * D:3 * D + 1, :]   # (1, 4D)

    # ---- Single fused input projection (+ bias) for ALL T steps. ------------
    # One (T*TB, 2D)@(2D, 4D) MXU call; every per-step slice below is a static
    # sublane window that sits OFF the serial h->h dependency chain.
    x2d = x_ref[0]                                              # (T*TB, 2D)
    xp_all = jnp.dot(x2d, wih, preferred_element_type=jnp.float32) + bias

    # ---- Fused bidirectional LSTM recurrence (layer 0), fully unrolled. -----
    # h = [h_fwd | h_bwd], c = [c_fwd | c_bwd]; gate layout [i | f | o | g]
    # (direction-minor inside each gate) -> 1 sigmoid + 1 tanh per step.
    h = jnp.zeros((TB, D), jnp.float32)
    c = jnp.zeros((TB, D), jnp.float32)
    for t in range(T):                                          # static unroll
        gates = xp_all[t * TB:(t + 1) * TB, :] + jnp.dot(
            h, whh, preferred_element_type=jnp.float32)
        sg = jax.nn.sigmoid(gates[:, :3 * D])                   # i | f | o
        gc = jnp.tanh(gates[:, 3 * D:])                         # cell candidate
        i_g = sg[:, 0 * D:1 * D]
        f_g = sg[:, 1 * D:2 * D]
        o_g = sg[:, 2 * D:3 * D]
        c = f_g * c + i_g * gc
        h = o_g * jnp.tanh(c)

    # By construction h == concat([h_n[0], h_n[1]]) of the PyTorch LSTM.
    # ---- Bounded recursive depth projections + mean over depth. -------------
    # (The 1/K mean scale is folded into the out_w column block wrapper-side.)
    cur = h
    acc = jnp.zeros((TB, D), jnp.float32)
    for i in range(K):                                          # static unroll
        cur = jnp.dot(cur, pw_ref[:, i * D:(i + 1) * D],
                      preferred_element_type=jnp.float32) + pb_ref[i]
        cur = _gelu_exact(cur)
        acc = acc + cur

    # ---- Output projection: Linear -> LayerNorm(eps=1e-5) -> GELU. ----------
    u = jnp.dot(acc, pw_ref[:, K * D:(K + 1) * D],
                preferred_element_type=jnp.float32) + pb_ref[K]
    mean = jnp.mean(u, axis=-1, keepdims=True)
    var = jnp.mean((u - mean) ** 2, axis=-1, keepdims=True)
    u_norm = (u - mean) * lax.rsqrt(var + 1e-5)
    u_ln = u_norm * pb_ref[K + 1] + pb_ref[K + 2]
    o_ref[...] = _gelu_exact(u_ln).astype(o_ref.dtype)


def _build_fused_lstm_weights(params, D):
    """Repack per-direction LSTM weights into the fused gate-major layout.

    Fused column layout (width 8H == 4D): for gate g in (i, f, o, g_cell) and
    direction d in (fwd, bwd), columns [g*2H + d*H : g*2H + (d+1)*H].
    Note the gate order is permuted from PyTorch's (i, f, g, o) to (i, f, o, g)
    so the three sigmoid gates are lane-contiguous.  Pure layout plumbing.
    """
    H = D // 2
    perm = [0, 1, 3, 2]   # PyTorch (i, f, g, o) -> kernel (i, f, o, g)

    wih_f = params["wih_f"].reshape(D, 4, H)[:, perm, :]
    wih_b = params["wih_b"].reshape(D, 4, H)[:, perm, :]
    whh_f = params["whh_f"].reshape(H, 4, H)[:, perm, :]
    whh_b = params["whh_b"].reshape(H, 4, H)[:, perm, :]
    b_f = params["b_f"].reshape(4, H)[perm, :]
    b_b = params["b_b"].reshape(4, H)[perm, :]

    # Input weights: rows 0:D act on x_t (fwd), rows D:2D on x_{T-1-t} (bwd).
    wih = jnp.zeros((2 * D, 4, 2, H), jnp.float32)
    wih = wih.at[:D, :, 0, :].set(wih_f)
    wih = wih.at[D:, :, 1, :].set(wih_b)
    wih = wih.reshape(2 * D, 4 * D)

    # Recurrent weights: block structure so h=[h_f|h_b] only feeds its own dir.
    whh = jnp.zeros((D, 4, 2, H), jnp.float32)
    whh = whh.at[:H, :, 0, :].set(whh_f)
    whh = whh.at[H:, :, 1, :].set(whh_b)
    whh = whh.reshape(D, 4 * D)

    b = jnp.stack([b_f, b_b], axis=1).reshape(1, 4 * D)
    return wih, whh, b


def simplified_recursive_self_model(x, params, *, batch_tiles=1):
    """x: (B, D) or (B, T, D) batch-first, matching the PyTorch module.

    batch_tiles=1 (default) runs the whole batch in one grid step (best on
    single-TensorCore v5e/v6e); pass batch_tiles=2 for large B on v7x so the
    "parallel" grid axis shards across its two TensorCores.
    """
    if x.ndim == 2:
        x = x[:, None, :]
    x = x.astype(jnp.float32)
    B, T, D = x.shape
    K = params["dp_w"].shape[0]                 # max_depth

    assert B % batch_tiles == 0, "batch_tiles must divide B"
    TB = B // batch_tiles

    # ---- Layout plumbing (wrapper side) --------------------------------------
    # Time-major, per-row fused fwd/bwd features [x_t | x_{T-1-t}], then split
    # into batch tiles and flatten (T, TB) -> T*TB rows so the kernel issues a
    # single fused input-projection matmul per tile.
    x_tm = jnp.transpose(x, (1, 0, 2))                         # (T, B, D)
    x_fused = jnp.concatenate([x_tm, x_tm[::-1]], axis=-1)     # (T, B, 2D)
    x_packed = (x_fused.reshape(T, batch_tiles, TB, 2 * D)
                       .transpose(1, 0, 2, 3)
                       .reshape(batch_tiles, T * TB, 2 * D))   # (tiles, T*TB, 2D)

    wih, whh, b = _build_fused_lstm_weights(params, D)
    lstm_slab = jnp.concatenate([wih, whh, b], axis=0)         # (3D+1, 4D)

    # Projection weight slab: [dp_w_0 | .. | dp_w_{K-1} | out_w / K]  (D, (K+1)D)
    proj_w = jnp.concatenate(
        [params["dp_w"][i] for i in range(K)] + [params["out_w"] * (1.0 / K)],
        axis=1)
    # Projection bias slab rows: dp_b_0..dp_b_{K-1}, out_b, ln_g, ln_b  (K+3, D)
    proj_b = jnp.concatenate(
        [params["dp_b"].reshape(K, D),
         params["out_b"].reshape(1, D),
         params["ln_g"].reshape(1, D),
         params["ln_b"].reshape(1, D)], axis=0)

    grid = (batch_tiles,)
    in_specs = [
        pl.BlockSpec((1, T * TB, 2 * D), lambda bb: (bb, 0, 0)),      # x tile
        pl.BlockSpec((3 * D + 1, 4 * D), lambda bb: (0, 0)),          # LSTM slab
        pl.BlockSpec((D, (K + 1) * D), lambda bb: (0, 0)),            # proj weights
        pl.BlockSpec((K + 3, D), lambda bb: (0, 0)),                  # proj biases
    ]
    out_spec = pl.BlockSpec((TB, D), lambda bb: (bb, 0))

    # Advisory cost estimate (kernel is tiny and latency-bound).
    flops = int(2 * T * B * (2 * D) * (4 * D)          # fused input projection
                + 2 * T * B * D * (4 * D)              # recurrent h @ W_hh
                + 2 * (K + 1) * B * D * D)             # depth + output projections
    transcendentals = int(T * B * 5 * D + (K + 1) * B * D + B)
    bytes_accessed = int(4 * (x_packed.size + lstm_slab.size
                              + proj_w.size + proj_b.size + B * D))

    unified_self = pl.pallas_call(
        recursive_self_model_kernel,
        out_shape=jax.ShapeDtypeStruct((B, D), jnp.float32),
        grid=grid,
        in_specs=in_specs,
        out_specs=out_spec,
        compiler_params=pltpu.CompilerParams(
            dimension_semantics=("parallel",)),
        cost_estimate=pl.CostEstimate(
            flops=flops,
            transcendentals=transcendentals,
            bytes_accessed=bytes_accessed),
    )(x_packed, lstm_slab, proj_w, proj_b)

    return {
        "unified_self": unified_self,
        "recursion_depth": K,
        "self_coherence": jnp.ones((B,), dtype=jnp.float32),
    }


def init_params(key, base_dim=32, max_depth=3):
    """Deterministic parameter init (PyTorch-style uniform ranges)."""
    D = base_dim
    H = D // 2
    ks = jax.random.split(key, 14)

    def u(k, shape, scale):
        return jax.random.uniform(k, shape, jnp.float32, -scale, scale)

    k_lstm = 1.0 / math.sqrt(H)
    k_lin = 1.0 / math.sqrt(D)
    return {
        # LSTM layer-0 forward direction (weights stored (in, 4H), PyTorch gate
        # order i|f|g|o along columns; bias = b_ih + b_hh)
        "wih_f": u(ks[0], (D, 4 * H), k_lstm),
        "whh_f": u(ks[1], (H, 4 * H), k_lstm),
        "b_f":   u(ks[2], (1, 4 * H), k_lstm) + u(ks[3], (1, 4 * H), k_lstm),
        # LSTM layer-0 backward direction
        "wih_b": u(ks[4], (D, 4 * H), k_lstm),
        "whh_b": u(ks[5], (H, 4 * H), k_lstm),
        "b_b":   u(ks[6], (1, 4 * H), k_lstm) + u(ks[7], (1, 4 * H), k_lstm),
        # depth projections, stored (depth, in, out)
        "dp_w":  u(ks[8], (max_depth, D, D), k_lin),
        "dp_b":  u(ks[9], (max_depth, 1, D), k_lin),
        # output projection Linear
        "out_w": u(ks[10], (D, D), k_lin),
        "out_b": u(ks[11], (1, D), k_lin),
        # LayerNorm affine params (ones / zeros, as nn.LayerNorm init)
        "ln_g":  jnp.ones((1, D), jnp.float32),
        "ln_b":  jnp.zeros((1, D), jnp.float32),
    }
    # TODO(synk): second LSTM layer + lstm_out are unused by the forward's outputs and are omitted.


if __name__ == "__main__":
    key = jax.random.PRNGKey(0)
    pkey, xkey = jax.random.split(key)

    base_dim, max_depth = 32, 3
    B, T = 2, 8

    params = init_params(pkey, base_dim=base_dim, max_depth=max_depth)
    x = jax.random.normal(xkey, (B, T, base_dim), jnp.float32)

    out = simplified_recursive_self_model(x, params)
    jax.block_until_ready(out["unified_self"])
    assert out["unified_self"].shape == (B, base_dim)
    assert out["self_coherence"].shape == (B,)
    print("KERNEL_OK")
</pallas_src>

<mosaic_0001>
module attributes {stable_mosaic.version = 11 : i64} {
  func.func @recursive_self_model_kernel(%arg0: i32, %arg1: memref<1x16x64xf32, #tpu.memory_space<vmem>>, %arg2: memref<97x128xf32, #tpu.memory_space<vmem>>, %arg3: memref<32x128xf32, #tpu.memory_space<vmem>>, %arg4: memref<6x32xf32, #tpu.memory_space<vmem>>, %arg5: memref<2x32xf32, #tpu.memory_space<vmem>>) attributes {dimension_semantics = [#tpu.dimension_semantics<parallel>], iteration_bounds = array<i64: 1>, scalar_prefetch = 0 : i64, scratch_operands = 0 : i64, tpu.core_type = #tpu.core_type<tc>, window_params = [{transform_indices = @transform_0, window_bounds = array<i64: 1, 16, 64>}, {pipeline_mode = #tpu.pipeline_mode<synchronous>, transform_indices = @transform_1, window_bounds = array<i64: 97, 128>}, {pipeline_mode = #tpu.pipeline_mode<synchronous>, transform_indices = @transform_2, window_bounds = array<i64: 32, 128>}, {pipeline_mode = #tpu.pipeline_mode<synchronous>, transform_indices = @transform_3, window_bounds = array<i64: 6, 32>}, {transform_indices = @transform_4, window_bounds = array<i64: 2, 32>}]} {
    %c0 = arith.constant 0 : index
    %c0_0 = arith.constant 0 : index
    %0 = vector.load %arg2[%c0, %c0_0] : memref<97x128xf32, #tpu.memory_space<vmem>>, vector<64x128xf32>
    %c64 = arith.constant 64 : index
    %c0_1 = arith.constant 0 : index
    %1 = vector.load %arg2[%c64, %c0_1] : memref<97x128xf32, #tpu.memory_space<vmem>>, vector<32x128xf32>
    %c96 = arith.constant 96 : index
    %c0_2 = arith.constant 0 : index
    %2 = vector.load %arg2[%c96, %c0_2] : memref<97x128xf32, #tpu.memory_space<vmem>>, vector<1x128xf32>
    %c0_3 = arith.constant 0 : index
    %c0_4 = arith.constant 0 : index
    %c0_5 = arith.constant 0 : index
    %3 = vector.load %arg1[%c0_3, %c0_4, %c0_5] : memref<1x16x64xf32, #tpu.memory_space<vmem>>, vector<1x16x64xf32>
    %4 = vector.shape_cast %3 : vector<1x16x64xf32> to vector<16x64xf32>
    %cst = arith.constant dense<0.000000e+00> : vector<16x128xf32>
    %5 = tpu.matmul %4, %0, %cst {dimension_numbers = #tpu.dot_dimension_numbers<[1], [0], [0], [1], [0, 0, 1, 1], [], []>} : vector<16x64xf32>, vector<64x128xf32>, vector<16x128xf32> -> vector<16x128xf32>
    %6 = vector.broadcast %2 : vector<1x128xf32> to vector<16x128xf32>
    %7 = arith.addf %5, %6 : vector<16x128xf32>
    %cst_6 = arith.constant 0.000000e+00 : f32
    %8 = vector.broadcast %cst_6 : f32 to vector<2x32xf32>
    %cst_7 = arith.constant 0.000000e+00 : f32
    %9 = vector.broadcast %cst_7 : f32 to vector<2x32xf32>
    %10 = vector.extract_strided_slice %7 {offsets = [0, 0], sizes = [2, 128], strides = [1, 1]} : vector<16x128xf32> to vector<2x128xf32>
    %cst_8 = arith.constant dense<0.000000e+00> : vector<2x128xf32>
    %11 = tpu.matmul %8, %1, %cst_8 {dimension_numbers = #tpu.dot_dimension_numbers<[1], [0], [0], [1], [0, 0, 1, 1], [], []>} : vector<2x32xf32>, vector<32x128xf32>, vector<2x128xf32> -> vector<2x128xf32>
    %12 = arith.addf %10, %11 : vector<2x128xf32>
    %13 = vector.extract_strided_slice %12 {offsets = [0, 0], sizes = [2, 96], strides = [1, 1]} : vector<2x128xf32> to vector<2x96xf32>
    %14 = arith.negf %13 : vector<2x96xf32>
    %15 = math.exp %14 : vector<2x96xf32>
    %cst_9 = arith.constant 1.000000e+00 : f32
    %16 = vector.broadcast %cst_9 : f32 to vector<2x96xf32>
    %17 = arith.addf %16, %15 : vector<2x96xf32>
    %18 = arith.divf %16, %17 : vector<2x96xf32>
    %19 = vector.extract_strided_slice %12 {offsets = [0, 96], sizes = [2, 32], strides = [1, 1]} : vector<2x128xf32> to vector<2x32xf32>
    %20 = math.tanh %19 : vector<2x32xf32>
    %21 = vector.extract_strided_slice %18 {offsets = [0, 0], sizes = [2, 32], strides = [1, 1]} : vector<2x96xf32> to vector<2x32xf32>
    %22 = vector.extract_strided_slice %18 {offsets = [0, 32], sizes = [2, 32], strides = [1, 1]} : vector<2x96xf32> to vector<2x32xf32>
    %23 = vector.extract_strided_slice %18 {offsets = [0, 64], sizes = [2, 32], strides = [1, 1]} : vector<2x96xf32> to vector<2x32xf32>
    %24 = arith.mulf %22, %9 : vector<2x32xf32>
    %25 = arith.mulf %21, %20 : vector<2x32xf32>
    %26 = arith.addf %24, %25 : vector<2x32xf32>
    %27 = math.tanh %26 : vector<2x32xf32>
    %28 = arith.mulf %23, %27 : vector<2x32xf32>
    %29 = vector.extract_strided_slice %7 {offsets = [2, 0], sizes = [2, 128], strides = [1, 1]} : vector<16x128xf32> to vector<2x128xf32>
    %cst_10 = arith.constant dense<0.000000e+00> : vector<2x128xf32>
    %30 = tpu.matmul %28, %1, %cst_10 {dimension_numbers = #tpu.dot_dimension_numbers<[1], [0], [0], [1], [0, 0, 1, 1], [], []>} : vector<2x32xf32>, vector<32x128xf32>, vector<2x128xf32> -> vector<2x128xf32>
    %31 = arith.addf %29, %30 : vector<2x128xf32>
    %32 = vector.extract_strided_slice %31 {offsets = [0, 0], sizes = [2, 96], strides = [1, 1]} : vector<2x128xf32> to vector<2x96xf32>
    %33 = arith.negf %32 : vector<2x96xf32>
    %34 = math.exp %33 : vector<2x96xf32>
    %cst_11 = arith.constant 1.000000e+00 : f32
    %35 = vector.broadcast %cst_11 : f32 to vector<2x96xf32>
    %36 = arith.addf %35, %34 : vector<2x96xf32>
    %37 = arith.divf %35, %36 : vector<2x96xf32>
    %38 = vector.extract_strided_slice %31 {offsets = [0, 96], sizes = [2, 32], strides = [1, 1]} : vector<2x128xf32> to vector<2x32xf32>
    %39 = math.tanh %38 : vector<2x32xf32>
    %40 = vector.extract_strided_slice %37 {offsets = [0, 0], sizes = [2, 32], strides = [1, 1]} : vector<2x96xf32> to vector<2x32xf32>
    %41 = vector.extract_strided_slice %37 {offsets = [0, 32], sizes = [2, 32], strides = [1, 1]} : vector<2x96xf32> to vector<2x32xf32>
    %42 = vector.extract_strided_slice %37 {offsets = [0, 64], sizes = [2, 32], strides = [1, 1]} : vector<2x96xf32> to vector<2x32xf32>
    %43 = arith.mulf %41, %26 : vector<2x32xf32>
    %44 = arith.mulf %40, %39 : vector<2x32xf32>
    %45 = arith.addf %43, %44 : vector<2x32xf32>
    %46 = math.tanh %45 : vector<2x32xf32>
    %47 = arith.mulf %42, %46 : vector<2x32xf32>
    %48 = vector.extract_strided_slice %7 {offsets = [4, 0], sizes = [2, 128], strides = [1, 1]} : vector<16x128xf32> to vector<2x128xf32>
    %cst_12 = arith.constant dense<0.000000e+00> : vector<2x128xf32>
    %49 = tpu.matmul %47, %1, %cst_12 {dimension_numbers = #tpu.dot_dimension_numbers<[1], [0], [0], [1], [0, 0, 1, 1], [], []>} : vector<2x32xf32>, vector<32x128xf32>, vector<2x128xf32> -> vector<2x128xf32>
    %50 = arith.addf %48, %49 : vector<2x128xf32>
    %51 = vector.extract_strided_slice %50 {offsets = [0, 0], sizes = [2, 96], strides = [1, 1]} : vector<2x128xf32> to vector<2x96xf32>
    %52 = arith.negf %51 : vector<2x96xf32>
    %53 = math.exp %52 : vector<2x96xf32>
    %cst_13 = arith.constant 1.000000e+00 : f32
    %54 = vector.broadcast %cst_13 : f32 to vector<2x96xf32>
    %55 = arith.addf %54, %53 : vector<2x96xf32>
    %56 = arith.divf %54, %55 : vector<2x96xf32>
    %57 = vector.extract_strided_slice %50 {offsets = [0, 96], sizes = [2, 32], strides = [1, 1]} : vector<2x128xf32> to vector<2x32xf32>
    %58 = math.tanh %57 : vector<2x32xf32>
    %59 = vector.extract_strided_slice %56 {offsets = [0, 0], sizes = [2, 32], strides = [1, 1]} : vector<2x96xf32> to vector<2x32xf32>
    %60 = vector.extract_strided_slice %56 {offsets = [0, 32], sizes = [2, 32], strides = [1, 1]} : vector<2x96xf32> to vector<2x32xf32>
    %61 = vector.extract_strided_slice %56 {offsets = [0, 64], sizes = [2, 32], strides = [1, 1]} : vector<2x96xf32> to vector<2x32xf32>
    %62 = arith.mulf %60, %45 : vector<2x32xf32>
    %63 = arith.mulf %59, %58 : vector<2x32xf32>
    %64 = arith.addf %62, %63 : vector<2x32xf32>
    %65 = math.tanh %64 : vector<2x32xf32>
    %66 = arith.mulf %61, %65 : vector<2x32xf32>
    %67 = vector.extract_strided_slice %7 {offsets = [6, 0], sizes = [2, 128], strides = [1, 1]} : vector<16x128xf32> to vector<2x128xf32>
    %cst_14 = arith.constant dense<0.000000e+00> : vector<2x128xf32>
    %68 = tpu.matmul %66, %1, %cst_14 {dimension_numbers = #tpu.dot_dimension_numbers<[1], [0], [0], [1], [0, 0, 1, 1], [], []>} : vector<2x32xf32>, vector<32x128xf32>, vector<2x128xf32> -> vector<2x128xf32>
    %69 = arith.addf %67, %68 : vector<2x128xf32>
    %70 = vector.extract_strided_slice %69 {offsets = [0, 0], sizes = [2, 96], strides = [1, 1]} : vector<2x128xf32> to vector<2x96xf32>
    %71 = arith.negf %70 : vector<2x96xf32>
    %72 = math.exp %71 : vector<2x96xf32>
    %cst_15 = arith.constant 1.000000e+00 : f32
    %73 = vector.broadcast %cst_15 : f32 to vector<2x96xf32>
    %74 = arith.addf %73, %72 : vector<2x96xf32>
    %75 = arith.divf %73, %74 : vector<2x96xf32>
    %76 = vector.extract_strided_slice %69 {offsets = [0, 96], sizes = [2, 32], strides = [1, 1]} : vector<2x128xf32> to vector<2x32xf32>
    %77 = math.tanh %76 : vector<2x32xf32>
    %78 = vector.extract_strided_slice %75 {offsets = [0, 0], sizes = [2, 32], strides = [1, 1]} : vector<2x96xf32> to vector<2x32xf32>
    %79 = vector.extract_strided_slice %75 {offsets = [0, 32], sizes = [2, 32], strides = [1, 1]} : vector<2x96xf32> to vector<2x32xf32>
    %80 = vector.extract_strided_slice %75 {offsets = [0, 64], sizes = [2, 32], strides = [1, 1]} : vector<2x96xf32> to vector<2x32xf32>
    %81 = arith.mulf %79, %64 : vector<2x32xf32>
    %82 = arith.mulf %78, %77 : vector<2x32xf32>
    %83 = arith.addf %81, %82 : vector<2x32xf32>
    %84 = math.tanh %83 : vector<2x32xf32>
    %85 = arith.mulf %80, %84 : vector<2x32xf32>
    %86 = vector.extract_strided_slice %7 {offsets = [8, 0], sizes = [2, 128], strides = [1, 1]} : vector<16x128xf32> to vector<2x128xf32>
    %cst_16 = arith.constant dense<0.000000e+00> : vector<2x128xf32>
    %87 = tpu.matmul %85, %1, %cst_16 {dimension_numbers = #tpu.dot_dimension_numbers<[1], [0], [0], [1], [0, 0, 1, 1], [], []>} : vector<2x32xf32>, vector<32x128xf32>, vector<2x128xf32> -> vector<2x128xf32>
    %88 = arith.addf %86, %87 : vector<2x128xf32>
    %89 = vector.extract_strided_slice %88 {offsets = [0, 0], sizes = [2, 96], strides = [1, 1]} : vector<2x128xf32> to vector<2x96xf32>
    %90 = arith.negf %89 : vector<2x96xf32>
    %91 = math.exp %90 : vector<2x96xf32>
    %cst_17 = arith.constant 1.000000e+00 : f32
    %92 = vector.broadcast %cst_17 : f32 to vector<2x96xf32>
    %93 = arith.addf %92, %91 : vector<2x96xf32>
    %94 = arith.divf %92, %93 : vector<2x96xf32>
    %95 = vector.extract_strided_slice %88 {offsets = [0, 96], sizes = [2, 32], strides = [1, 1]} : vector<2x128xf32> to vector<2x32xf32>
    %96 = math.tanh %95 : vector<2x32xf32>
    %97 = vector.extract_strided_slice %94 {offsets = [0, 0], sizes = [2, 32], strides = [1, 1]} : vector<2x96xf32> to vector<2x32xf32>
    %98 = vector.extract_strided_slice %94 {offsets = [0, 32], sizes = [2, 32], strides = [1, 1]} : vector<2x96xf32> to vector<2x32xf32>
    %99 = vector.extract_strided_slice %94 {offsets = [0, 64], sizes = [2, 32], strides = [1, 1]} : vector<2x96xf32> to vector<2x32xf32>
    %100 = arith.mulf %98, %83 : vector<2x32xf32>
    %101 = arith.mulf %97, %96 : vector<2x32xf32>
    %102 = arith.addf %100, %101 : vector<2x32xf32>
    %103 = math.tanh %102 : vector<2x32xf32>
    %104 = arith.mulf %99, %103 : vector<2x32xf32>
    %105 = vector.extract_strided_slice %7 {offsets = [10, 0], sizes = [2, 128], strides = [1, 1]} : vector<16x128xf32> to vector<2x128xf32>
    %cst_18 = arith.constant dense<0.000000e+00> : vector<2x128xf32>
    %106 = tpu.matmul %104, %1, %cst_18 {dimension_numbers = #tpu.dot_dimension_numbers<[1], [0], [0], [1], [0, 0, 1, 1], [], []>} : vector<2x32xf32>, vector<32x128xf32>, vector<2x128xf32> -> vector<2x128xf32>
    %107 = arith.addf %105, %106 : vector<2x128xf32>
    %108 = vector.extract_strided_slice %107 {offsets = [0, 0], sizes = [2, 96], strides = [1, 1]} : vector<2x128xf32> to vector<2x96xf32>
    %109 = arith.negf %108 : vector<2x96xf32>
    %110 = math.exp %109 : vector<2x96xf32>
    %cst_19 = arith.constant 1.000000e+00 : f32
    %111 = vector.broadcast %cst_19 : f32 to vector<2x96xf32>
    %112 = arith.addf %111, %110 : vector<2x96xf32>
    %113 = arith.divf %111, %112 : vector<2x96xf32>
    %114 = vector.extract_strided_slice %107 {offsets = [0, 96], sizes = [2, 32], strides = [1, 1]} : vector<2x128xf32> to vector<2x32xf32>
    %115 = math.tanh %114 : vector<2x32xf32>
    %116 = vector.extract_strided_slice %113 {offsets = [0, 0], sizes = [2, 32], strides = [1, 1]} : vector<2x96xf32> to vector<2x32xf32>
    %117 = vector.extract_strided_slice %113 {offsets = [0, 32], sizes = [2, 32], strides = [1, 1]} : vector<2x96xf32> to vector<2x32xf32>
    %118 = vector.extract_strided_slice %113 {offsets = [0, 64], sizes = [2, 32], strides = [1, 1]} : vector<2x96xf32> to vector<2x32xf32>
    %119 = arith.mulf %117, %102 : vector<2x32xf32>
    %120 = arith.mulf %116, %115 : vector<2x32xf32>
    %121 = arith.addf %119, %120 : vector<2x32xf32>
    %122 = math.tanh %121 : vector<2x32xf32>
    %123 = arith.mulf %118, %122 : vector<2x32xf32>
    %124 = vector.extract_strided_slice %7 {offsets = [12, 0], sizes = [2, 128], strides = [1, 1]} : vector<16x128xf32> to vector<2x128xf32>
    %cst_20 = arith.constant dense<0.000000e+00> : vector<2x128xf32>
    %125 = tpu.matmul %123, %1, %cst_20 {dimension_numbers = #tpu.dot_dimension_numbers<[1], [0], [0], [1], [0, 0, 1, 1], [], []>} : vector<2x32xf32>, vector<32x128xf32>, vector<2x128xf32> -> vector<2x128xf32>
    %126 = arith.addf %124, %125 : vector<2x128xf32>
    %127 = vector.extract_strided_slice %126 {offsets = [0, 0], sizes = [2, 96], strides = [1, 1]} : vector<2x128xf32> to vector<2x96xf32>
    %128 = arith.negf %127 : vector<2x96xf32>
    %129 = math.exp %128 : vector<2x96xf32>
    %cst_21 = arith.constant 1.000000e+00 : f32
    %130 = vector.broadcast %cst_21 : f32 to vector<2x96xf32>
    %131 = arith.addf %130, %129 : vector<2x96xf32>
    %132 = arith.divf %130, %131 : vector<2x96xf32>
    %133 = vector.extract_strided_slice %126 {offsets = [0, 96], sizes = [2, 32], strides = [1, 1]} : vector<2x128xf32> to vector<2x32xf32>
    %134 = math.tanh %133 : vector<2x32xf32>
    %135 = vector.extract_strided_slice %132 {offsets = [0, 0], sizes = [2, 32], strides = [1, 1]} : vector<2x96xf32> to vector<2x32xf32>
    %136 = vector.extract_strided_slice %132 {offsets = [0, 32], sizes = [2, 32], strides = [1, 1]} : vector<2x96xf32> to vector<2x32xf32>
    %137 = vector.extract_strided_slice %132 {offsets = [0, 64], sizes = [2, 32], strides = [1, 1]} : vector<2x96xf32> to vector<2x32xf32>
    %138 = arith.mulf %136, %121 : vector<2x32xf32>
    %139 = arith.mulf %135, %134 : vector<2x32xf32>
    %140 = arith.addf %138, %139 : vector<2x32xf32>
    %141 = math.tanh %140 : vector<2x32xf32>
    %142 = arith.mulf %137, %141 : vector<2x32xf32>
    %143 = vector.extract_strided_slice %7 {offsets = [14, 0], sizes = [2, 128], strides = [1, 1]} : vector<16x128xf32> to vector<2x128xf32>
    %cst_22 = arith.constant dense<0.000000e+00> : vector<2x128xf32>
    %144 = tpu.matmul %142, %1, %cst_22 {dimension_numbers = #tpu.dot_dimension_numbers<[1], [0], [0], [1], [0, 0, 1, 1], [], []>} : vector<2x32xf32>, vector<32x128xf32>, vector<2x128xf32> -> vector<2x128xf32>
    %145 = arith.addf %143, %144 : vector<2x128xf32>
    %146 = vector.extract_strided_slice %145 {offsets = [0, 0], sizes = [2, 96], strides = [1, 1]} : vector<2x128xf32> to vector<2x96xf32>
    %147 = arith.negf %146 : vector<2x96xf32>
    %148 = math.exp %147 : vector<2x96xf32>
    %cst_23 = arith.constant 1.000000e+00 : f32
    %149 = vector.broadcast %cst_23 : f32 to vector<2x96xf32>
    %150 = arith.addf %149, %148 : vector<2x96xf32>
    %151 = arith.divf %149, %150 : vector<2x96xf32>
    %152 = vector.extract_strided_slice %145 {offsets = [0, 96], sizes = [2, 32], strides = [1, 1]} : vector<2x128xf32> to vector<2x32xf32>
    %153 = math.tanh %152 : vector<2x32xf32>
    %154 = vector.extract_strided_slice %151 {offsets = [0, 0], sizes = [2, 32], strides = [1, 1]} : vector<2x96xf32> to vector<2x32xf32>
    %155 = vector.extract_strided_slice %151 {offsets = [0, 32], sizes = [2, 32], strides = [1, 1]} : vector<2x96xf32> to vector<2x32xf32>
    %156 = vector.extract_strided_slice %151 {offsets = [0, 64], sizes = [2, 32], strides = [1, 1]} : vector<2x96xf32> to vector<2x32xf32>
    %157 = arith.mulf %155, %140 : vector<2x32xf32>
    %158 = arith.mulf %154, %153 : vector<2x32xf32>
    %159 = arith.addf %157, %158 : vector<2x32xf32>
    %160 = math.tanh %159 : vector<2x32xf32>
    %161 = arith.mulf %156, %160 : vector<2x32xf32>
    %cst_24 = arith.constant 0.000000e+00 : f32
    %162 = vector.broadcast %cst_24 : f32 to vector<2x32xf32>
    %c0_25 = arith.constant 0 : index
    %c0_26 = arith.constant 0 : index
    %163 = vector.load %arg3[%c0_25, %c0_26] : memref<32x128xf32, #tpu.memory_space<vmem>>, vector<32x32xf32>
    %cst_27 = arith.constant dense<0.000000e+00> : vector<2x32xf32>
    %164 = tpu.matmul %161, %163, %cst_27 {dimension_numbers = #tpu.dot_dimension_numbers<[1], [0], [0], [1], [0, 0, 1, 1], [], []>} : vector<2x32xf32>, vector<32x32xf32>, vector<2x32xf32> -> vector<2x32xf32>
    %c0_28 = arith.constant 0 : index
    %c0_29 = arith.constant 0 : index
    %165 = vector.load %arg4[%c0_28, %c0_29] : memref<6x32xf32, #tpu.memory_space<vmem>>, vector<1x32xf32>
    %166 = vector.shape_cast %165 : vector<1x32xf32> to vector<32xf32>
    %167 = vector.shape_cast %166 : vector<32xf32> to vector<1x32xf32>
    %168 = vector.broadcast %167 : vector<1x32xf32> to vector<2x32xf32>
    %169 = arith.addf %164, %168 : vector<2x32xf32>
    %cst_30 = arith.constant 5.000000e-01 : f32
    %170 = vector.broadcast %cst_30 : f32 to vector<2x32xf32>
    %171 = arith.mulf %170, %169 : vector<2x32xf32>
    %cst_31 = arith.constant 1.41421354 : f32
    %172 = vector.broadcast %cst_31 : f32 to vector<2x32xf32>
    %173 = arith.divf %169, %172 : vector<2x32xf32>
    %174 = math.erf %173 : vector<2x32xf32>
    %cst_32 = arith.constant 1.000000e+00 : f32
    %175 = vector.broadcast %cst_32 : f32 to vector<2x32xf32>
    %176 = arith.addf %175, %174 : vector<2x32xf32>
    %177 = arith.mulf %171, %176 : vector<2x32xf32>
    %178 = arith.addf %162, %177 : vector<2x32xf32>
    %c0_33 = arith.constant 0 : index
    %c32 = arith.constant 32 : index
    %179 = vector.load %arg3[%c0_33, %c32] : memref<32x128xf32, #tpu.memory_space<vmem>>, vector<32x32xf32>
    %cst_34 = arith.constant dense<0.000000e+00> : vector<2x32xf32>
    %180 = tpu.matmul %177, %179, %cst_34 {dimension_numbers = #tpu.dot_dimension_numbers<[1], [0], [0], [1], [0, 0, 1, 1], [], []>} : vector<2x32xf32>, vector<32x32xf32>, vector<2x32xf32> -> vector<2x32xf32>
    %c1 = arith.constant 1 : index
    %c0_35 = arith.constant 0 : index
    %181 = vector.load %arg4[%c1, %c0_35] : memref<6x32xf32, #tpu.memory_space<vmem>>, vector<1x32xf32>
    %182 = vector.shape_cast %181 : vector<1x32xf32> to vector<32xf32>
    %183 = vector.shape_cast %182 : vector<32xf32> to vector<1x32xf32>
    %184 = vector.broadcast %183 : vector<1x32xf32> to vector<2x32xf32>
    %185 = arith.addf %180, %184 : vector<2x32xf32>
    %cst_36 = arith.constant 5.000000e-01 : f32
    %186 = vector.broadcast %cst_36 : f32 to vector<2x32xf32>
    %187 = arith.mulf %186, %185 : vector<2x32xf32>
    %cst_37 = arith.constant 1.41421354 : f32
    %188 = vector.broadcast %cst_37 : f32 to vector<2x32xf32>
    %189 = arith.divf %185, %188 : vector<2x32xf32>
    %190 = math.erf %189 : vector<2x32xf32>
    %cst_38 = arith.constant 1.000000e+00 : f32
    %191 = vector.broadcast %cst_38 : f32 to vector<2x32xf32>
    %192 = arith.addf %191, %190 : vector<2x32xf32>
    %193 = arith.mulf %187, %192 : vector<2x32xf32>
    %194 = arith.addf %178, %193 : vector<2x32xf32>
    %c0_39 = arith.constant 0 : index
    %c64_40 = arith.constant 64 : index
    %195 = vector.load %arg3[%c0_39, %c64_40] : memref<32x128xf32, #tpu.memory_space<vmem>>, vector<32x32xf32>
    %cst_41 = arith.constant dense<0.000000e+00> : vector<2x32xf32>
    %196 = tpu.matmul %193, %195, %cst_41 {dimension_numbers = #tpu.dot_dimension_numbers<[1], [0], [0], [1], [0, 0, 1, 1], [], []>} : vector<2x32xf32>, vector<32x32xf32>, vector<2x32xf32> -> vector<2x32xf32>
    %c2 = arith.constant 2 : index
    %c0_42 = arith.constant 0 : index
    %197 = vector.load %arg4[%c2, %c0_42] : memref<6x32xf32, #tpu.memory_space<vmem>>, vector<1x32xf32>
    %198 = vector.shape_cast %197 : vector<1x32xf32> to vector<32xf32>
    %199 = vector.shape_cast %198 : vector<32xf32> to vector<1x32xf32>
    %200 = vector.broadcast %199 : vector<1x32xf32> to vector<2x32xf32>
    %201 = arith.addf %196, %200 : vector<2x32xf32>
    %cst_43 = arith.constant 5.000000e-01 : f32
    %202 = vector.broadcast %cst_43 : f32 to vector<2x32xf32>
    %203 = arith.mulf %202, %201 : vector<2x32xf32>
    %cst_44 = arith.constant 1.41421354 : f32
    %204 = vector.broadcast %cst_44 : f32 to vector<2x32xf32>
    %205 = arith.divf %201, %204 : vector<2x32xf32>
    %206 = math.erf %205 : vector<2x32xf32>
    %cst_45 = arith.constant 1.000000e+00 : f32
    %207 = vector.broadcast %cst_45 : f32 to vector<2x32xf32>
    %208 = arith.addf %207, %206 : vector<2x32xf32>
    %209 = arith.mulf %203, %208 : vector<2x32xf32>
    %210 = arith.addf %194, %209 : vector<2x32xf32>
    %c0_46 = arith.constant 0 : index
    %c96_47 = arith.constant 96 : index
    %211 = vector.load %arg3[%c0_46, %c96_47] : memref<32x128xf32, #tpu.memory_space<vmem>>, vector<32x32xf32>
    %cst_48 = arith.constant dense<0.000000e+00> : vector<2x32xf32>
    %212 = tpu.matmul %210, %211, %cst_48 {dimension_numbers = #tpu.dot_dimension_numbers<[1], [0], [0], [1], [0, 0, 1, 1], [], []>} : vector<2x32xf32>, vector<32x32xf32>, vector<2x32xf32> -> vector<2x32xf32>
    %c3 = arith.constant 3 : index
    %c0_49 = arith.constant 0 : index
    %213 = vector.load %arg4[%c3, %c0_49] : memref<6x32xf32, #tpu.memory_space<vmem>>, vector<1x32xf32>
    %214 = vector.shape_cast %213 : vector<1x32xf32> to vector<32xf32>
    %215 = vector.shape_cast %214 : vector<32xf32> to vector<1x32xf32>
    %216 = vector.broadcast %215 : vector<1x32xf32> to vector<2x32xf32>
    %217 = arith.addf %212, %216 : vector<2x32xf32>
    %cst_50 = arith.constant dense<0.000000e+00> : vector<2xf32>
    %218 = vector.multi_reduction <add>, %217, %cst_50 [1] : vector<2x32xf32> to vector<2xf32>
    %219 = vector.shape_cast %218 : vector<2xf32> to vector<2x1xf32>
    %cst_51 = arith.constant 3.200000e+01 : f32
    %220 = vector.broadcast %cst_51 : f32 to vector<2x1xf32>
    %221 = arith.divf %219, %220 : vector<2x1xf32>
    %222 = vector.broadcast %221 : vector<2x1xf32> to vector<2x32xf32>
    %223 = arith.subf %217, %222 : vector<2x32xf32>
    %224 = arith.mulf %223, %223 : vector<2x32xf32>
    %cst_52 = arith.constant dense<0.000000e+00> : vector<2xf32>
    %225 = vector.multi_reduction <add>, %224, %cst_52 [1] : vector<2x32xf32> to vector<2xf32>
    %226 = vector.shape_cast %225 : vector<2xf32> to vector<2x1xf32>
    %cst_53 = arith.constant 3.200000e+01 : f32
    %227 = vector.broadcast %cst_53 : f32 to vector<2x1xf32>
    %228 = arith.divf %226, %227 : vector<2x1xf32>
    %229 = vector.broadcast %221 : vector<2x1xf32> to vector<2x32xf32>
    %230 = arith.subf %217, %229 : vector<2x32xf32>
    %cst_54 = arith.constant 9.99999974E-6 : f32
    %231 = vector.broadcast %cst_54 : f32 to vector<2x1xf32>
    %232 = arith.addf %228, %231 : vector<2x1xf32>
    %233 = math.rsqrt %232 : vector<2x1xf32>
    %234 = vector.broadcast %233 : vector<2x1xf32> to vector<2x32xf32>
    %235 = arith.mulf %230, %234 : vector<2x32xf32>
    %c4 = arith.constant 4 : index
    %c0_55 = arith.constant 0 : index
    %236 = vector.load %arg4[%c4, %c0_55] : memref<6x32xf32, #tpu.memory_space<vmem>>, vector<1x32xf32>
    %237 = vector.shape_cast %236 : vector<1x32xf32> to vector<32xf32>
    %238 = vector.shape_cast %237 : vector<32xf32> to vector<1x32xf32>
    %239 = vector.broadcast %238 : vector<1x32xf32> to vector<2x32xf32>
    %240 = arith.mulf %235, %239 : vector<2x32xf32>
    %c5 = arith.constant 5 : index
    %c0_56 = arith.constant 0 : index
    %241 = vector.load %arg4[%c5, %c0_56] : memref<6x32xf32, #tpu.memory_space<vmem>>, vector<1x32xf32>
    %242 = vector.shape_cast %241 : vector<1x32xf32> to vector<32xf32>
    %243 = vector.shape_cast %242 : vector<32xf32> to vector<1x32xf32>
    %244 = vector.broadcast %243 : vector<1x32xf32> to vector<2x32xf32>
    %245 = arith.addf %240, %244 : vector<2x32xf32>
    %cst_57 = arith.constant 5.000000e-01 : f32
    %246 = vector.broadcast %cst_57 : f32 to vector<2x32xf32>
    %247 = arith.mulf %246, %245 : vector<2x32xf32>
    %cst_58 = arith.constant 1.41421354 : f32
    %248 = vector.broadcast %cst_58 : f32 to vector<2x32xf32>
    %249 = arith.divf %245, %248 : vector<2x32xf32>
    %250 = math.erf %249 : vector<2x32xf32>
    %cst_59 = arith.constant 1.000000e+00 : f32
    %251 = vector.broadcast %cst_59 : f32 to vector<2x32xf32>
    %252 = arith.addf %251, %250 : vector<2x32xf32>
    %253 = arith.mulf %247, %252 : vector<2x32xf32>
    %c0_60 = arith.constant 0 : index
    %c0_61 = arith.constant 0 : index
    %254 = vector.load %arg5[%c0_60, %c0_61] : memref<2x32xf32, #tpu.memory_space<vmem>>, vector<2x32xf32>
    tpu.vector_store %arg5[%c0_60, %c0_61], %253 {strides = array<i32>} : memref<2x32xf32, #tpu.memory_space<vmem>>, vector<2x32xf32>,
    return
  }
  func.func @transform_0(%arg0: i32) -> (i32, i32, i32) {
    %c0_i32 = arith.constant 0 : i32
    %c0_i32_0 = arith.constant 0 : i32
    %c0_i32_1 = arith.constant 0 : i32
    return %arg0, %c0_i32, %c0_i32_0 : i32, i32, i32
  }
  func.func @transform_1(%arg0: i32) -> (i32, i32) {
    %c0_i32 = arith.constant 0 : i32
    %c0_i32_0 = arith.constant 0 : i32
    %c0_i32_1 = arith.constant 0 : i32
    return %c0_i32, %c0_i32_0 : i32, i32
  }
  func.func @transform_2(%arg0: i32) -> (i32, i32) {
    %c0_i32 = arith.constant 0 : i32
    %c0_i32_0 = arith.constant 0 : i32
    %c0_i32_1 = arith.constant 0 : i32
    return %c0_i32, %c0_i32_0 : i32, i32
  }
  func.func @transform_3(%arg0: i32) -> (i32, i32) {
    %c0_i32 = arith.constant 0 : i32
    %c0_i32_0 = arith.constant 0 : i32
    %c0_i32_1 = arith.constant 0 : i32
    return %c0_i32, %c0_i32_0 : i32, i32
  }
  func.func @transform_4(%arg0: i32) -> (i32, i32) {
    %c0_i32 = arith.constant 0 : i32
    %c0_i32_0 = arith.constant 0 : i32
    return %arg0, %c0_i32 : i32, i32
  }
}

</mosaic_0001>

<llo_original>
// kernel: tpu_custom_call.1
$region0: #{tpu_custom_call.1}
  #allocation0 [shape = 'u32[]', space=smem, size = 0x4, offset = 0x4, fixed_abs, tag = 'smem constant byte address 0x4 - core index']
  #allocation1 [shape = 'u32[72,128]{1,0:T(1,128)}', space=vmem, size = 0x9000, scoped, tag = 'internal scratch']
  %s0 = inlined_call_operand.hbm [shape: f32[1,16,64], index: 0, kind: input, shape index: {}]
  %s1 = inlined_call_operand.hbm [shape: f32[97,128], index: 1, kind: input, shape index: {}]
  %s2 = inlined_call_operand.hbm [shape: f32[32,128], index: 2, kind: input, shape index: {}]
  %s3 = inlined_call_operand.hbm [shape: f32[6,32], index: 3, kind: input, shape index: {}]
  %s4 = inlined_call_operand.hbm [shape: f32[2,32], index: 4, kind: output, shape index: {}]
  %s5 = sld [smem:[#allocation0]]
  $region42: #{tpu_custom_call.1} parent=0
    _
  %s7 = ssub.s32 1, %s5
  %s8 = scalar_select 0, %s7, %s5
  $region1: #{tpu_custom_call.1} parent=0
    #allocation2 [shape = 'u8[8192]{0}', space=vmem, size = 0x2000, scoped, tag = 'input window, operand 0, single buffered']
    #allocation3 [shape = 's32[1]{0}', space=sflag, size = 0x4, scoped, tag = 'scoped memory for tpu_custom_call.1']
    #allocation4 [shape = 's32[1]{0}', space=sflag, size = 0x4, scoped, tag = 'scoped memory for tpu_custom_call.1']
    #allocation5 [shape = 'u8[53248]{0}', space=vmem, size = 0xd000, scoped, tag = 'input window, operand 1, single buffered']
    #allocation6 [shape = 's32[1]{0}', space=sflag, size = 0x4, scoped, tag = 'scoped memory for tpu_custom_call.1']
    #allocation7 [shape = 'u8[16384]{0}', space=vmem, size = 0x4000, scoped, tag = 'input window, operand 2, single buffered']
    #allocation8 [shape = 'u8[4096]{0}', space=vmem, size = 0x1000, scoped, tag = 'input window, operand 3, single buffered']
    #allocation9 [shape = 's32[1]{0}', space=sflag, size = 0x4, scoped, tag = 'scoped memory for tpu_custom_call.1']
    #allocation10 [shape = 'u8[1024]{0}', space=vmem, size = 0x400, scoped, tag = 'output window, operand 0, single buffered']
    %9 = vsyncpa [#allocation3], 0
    %10 = vsyncpa [#allocation6], 0
    %11 = vsyncpa [#allocation9], 0
    %12 = vsyncpa [#allocation4], 0
    // Predicated region
    $region2: #{tpu_custom_call.1} parent=1 // pred_check
      _
    $region3: #{tpu_custom_call.1} parent=1 // pred_check_branch
      %14 = sbr.rel (0) target = $region5
    $region4: #{tpu_custom_call.1} parent=1 // pred_region
      %16 = vsyncadd [#allocation3], 0
      %s17 = sshll.u32 %s0, 4
      %s18 = int_to_ptr.hbm [resolvable:$true] %s17
      %s19 = sshll.u32 [#allocation2], 4
      %s20 = int_to_ptr.vmem [resolvable:$true] %s19
      %25 = dma.hbm_to_vmem [thread:$0]  %s18, 256, %s20, [#allocation3], 128, 128, 8
    $region5: #{tpu_custom_call.1} parent=1 // pred_fallthru
      _
    // Predicated region
    $region6: #{tpu_custom_call.1} parent=1 // pred_check
      _
    $region7: #{tpu_custom_call.1} parent=1 // pred_check_branch
      %27 = sbr.rel (0) target = $region9
    $region8: #{tpu_custom_call.1} parent=1 // pred_region
      %29 = vsyncadd [#allocation6], 0
      %s30 = sshll.u32 %s1, 4
      %s31 = int_to_ptr.hbm [resolvable:$true] %s30
      %s32 = sshll.u32 [#allocation5], 4
      %s33 = int_to_ptr.vmem [resolvable:$true] %s32
      %38 = dma.hbm_to_vmem [thread:$0]  %s31, 1664, %s33, [#allocation6], 128, 128, 8
    $region9: #{tpu_custom_call.1} parent=1 // pred_fallthru
      _
    // Predicated region
    $region10: #{tpu_custom_call.1} parent=1 // pred_check
      _
    $region11: #{tpu_custom_call.1} parent=1 // pred_check_branch
      %40 = sbr.rel (0) target = $region13
    $region12: #{tpu_custom_call.1} parent=1 // pred_region
      %42 = vsyncadd [#allocation6], 0
      %s43 = sshll.u32 %s2, 4
      %s44 = int_to_ptr.hbm [resolvable:$true] %s43
      %s45 = sshll.u32 [#allocation7], 4
      %s46 = int_to_ptr.vmem [resolvable:$true] %s45
      %51 = dma.hbm_to_vmem [thread:$0]  %s44, 512, %s46, [#allocation6], 128, 128, 8
    $region13: #{tpu_custom_call.1} parent=1 // pred_fallthru
      _
    // Predicated region
    $region14: #{tpu_custom_call.1} parent=1 // pred_check
      _
    $region15: #{tpu_custom_call.1} parent=1 // pred_check_branch
      %53 = sbr.rel (0) target = $region17
    $region16: #{tpu_custom_call.1} parent=1 // pred_region
      %55 = vsyncadd [#allocation9], 0
      %s57 = sshll.u32 %s3, 4
      %s58 = int_to_ptr.hbm [resolvable:$true] %s57
      %s59 = sshll.u32 [#allocation8], 4
      %s60 = int_to_ptr.vmem [resolvable:$true] %s59
      %62 = dma.hbm_to_vmem [thread:$0]  %s58, 128, %s60, [#allocation9]
    $region17: #{tpu_custom_call.1} parent=1 // pred_fallthru
      _
    // Predicated region
    $region18: #{tpu_custom_call.1} parent=1 // pred_check
      _
    $region19: #{tpu_custom_call.1} parent=1 // pred_check_branch
      %64 = sbr.rel (0) target = $region21
    $region20: #{tpu_custom_call.1} parent=1 // pred_region
      %66 = dma.done [#allocation3], 256
    $region21: #{tpu_custom_call.1} parent=1 // pred_fallthru
      _
    // Predicated region
    $region22: #{tpu_custom_call.1} parent=1 // pred_check
      _
    $region23: #{tpu_custom_call.1} parent=1 // pred_check_branch
      %68 = sbr.rel (0) target = $region25
    $region24: #{tpu_custom_call.1} parent=1 // pred_region
      %70 = dma.done [#allocation6], 1664
    $region25: #{tpu_custom_call.1} parent=1 // pred_fallthru
      _
    // Predicated region
    $region26: #{tpu_custom_call.1} parent=1 // pred_check
      _
    $region27: #{tpu_custom_call.1} parent=1 // pred_check_branch
      %72 = sbr.rel (0) target = $region29
    $region28: #{tpu_custom_call.1} parent=1 // pred_region
      %74 = dma.done [#allocation6], 512
    $region29: #{tpu_custom_call.1} parent=1 // pred_fallthru
      _
    // Predicated region
    $region30: #{tpu_custom_call.1} parent=1 // pred_check
      _
    $region31: #{tpu_custom_call.1} parent=1 // pred_check_branch
      %76 = sbr.rel (0) target = $region33
    $region32: #{tpu_custom_call.1} parent=1 // pred_region
      %78 = dma.done [#allocation9], 128
    $region33: #{tpu_custom_call.1} parent=1 // pred_fallthru
      _
    %v79 = vld [vmem:[#allocation5] sm:$0xff]
    %v80 = vld [vmem:[#allocation5 + $0x8] sm:$0xff]
    %v81 = vld [vmem:[#allocation5 + $0x10] sm:$0xff]
    %v82 = vld [vmem:[#allocation5 + $0x18] sm:$0xff]
    %v83 = vld [vmem:[#allocation5 + $0x20] sm:$0xff]
    %v84 = vld [vmem:[#allocation5 + $0x28] sm:$0xff]
    %v85 = vld [vmem:[#allocation5 + $0x30] sm:$0xff]
    %v86 = vld [vmem:[#allocation5 + $0x38] sm:$0xff]
    %v87 = vld [vmem:[#allocation5 + $0x40] sm:$0xff]
    %v88 = vld [vmem:[#allocation5 + $0x48] sm:$0xff]
    %v89 = vld [vmem:[#allocation5 + $0x50] sm:$0xff]
    %v90 = vld [vmem:[#allocation5 + $0x58] sm:$0xff]
    %v91 = vld [vmem:[#allocation5 + $0x60] sm:$0x1]
    %v92 = vld [vmem:[#allocation2] sm:$0xff]
    %v93 = vld [vmem:[#allocation2 + $0x8] sm:$0xff]
    %v94 = vperm.slane %v91, 0
    %vm95 = vcmask 523264
    %v97 = vsel %vm95, %v92, 0
    %v100 = vsel %vm95, %v93, 0
    %102 = vmatpush.msra.mxu0 0.0
    %103 = vmatpush.msra.mxu0 0.0
    %104 = vmatpush.msra.mxu0 0.0
    %105 = vmatpush.msra.mxu0 0.0
    %106 = vmatpush.msra.mxu0 0.0
    %107 = vmatpush.msra.mxu0 0.0
    %108 = vmatpush.msra.mxu0 0.0
    %109 = vmatpush.msra.mxu0 0.0
    %110 = vmatpush.msra.mxu0 %v86
    %111 = vmatpush.msra.mxu0 %v85
    %112 = vmatpush.msra.mxu0 %v84
    %113 = vmatpush.msra.mxu0 %v83
    %114 = vmatpush.msra.mxu0 %v82
    %115 = vmatpush.msra.mxu0 %v81
    %116 = vmatpush.msra.mxu0 %v80
    %117 = vmatpush.msra.mxu0 %v79
    %118 = vmatmul.f32.gmra.mxu0 %v97
    %v119 = vpop.f32.mrf.mxu0
    %v120 = vadd.f32 %v94, %v119
    %121 = vmatmul.f32.gmra.mxu0 %v100
    %v122 = vpop.f32.mrf.mxu0
    %v123 = vadd.f32 %v94, %v122
    %124 = vdwg.mxu0
    %vm125 = vcmask 261120
    %v127 = vsel %vm125, 0.0, 0
    %129 = vmatpush.msra.mxu0 0.0
    %130 = vmatpush.msra.mxu0 0.0
    %131 = vmatpush.msra.mxu0 0.0
    %132 = vmatpush.msra.mxu0 0.0
    %133 = vmatpush.msra.mxu0 0.0
    %134 = vmatpush.msra.mxu0 0.0
    %135 = vmatpush.msra.mxu0 0.0
    %136 = vmatpush.msra.mxu0 0.0
    %137 = vmatpush.msra.mxu0 0.0
    %138 = vmatpush.msra.mxu0 0.0
    %139 = vmatpush.msra.mxu0 0.0
    %140 = vmatpush.msra.mxu0 0.0
    %141 = vmatpush.msra.mxu0 %v90
    %142 = vmatpush.msra.mxu0 %v89
    %143 = vmatpush.msra.mxu0 %v88
    %144 = vmatpush.msra.mxu0 %v87
    %145 = vmatmul.f32.gmra.mxu0 %v127
    %v146 = vpop.f32.mrf.mxu0
    %v147 = vadd.f32 0.0, %v146
    %148 = vdwg.mxu0
    %v149 = vadd.f32 %v120, %v147
    %v150 = vxor.u32 %v149, 2147483648
    %v151 = vmul.f32 %v150, 1.442695
    %v152 = vpow.pop %v151
    %v153 = vadd.f32 %v152, 1.0
    %v154 = vrcp.pop %v153
    %v155 = vmul.f32 %v153, %v154
    %v156 = vsub.f32 1.0, %v155
    %v157 = vmul.f32 %v154, %v156
    %v158 = vadd.f32 %v154, %v157
    %vm159 = vweird.f32 %v153
    %vm160 = vweird.f32 %v154
    %vm161 = vmor %vm159, %vm160
    %v162 = vsel %vm161, %v154, %v158
    %v163 = vand.u32 2147483647, %v153
    %vm164 = vcmp.eq.f32.partialorder %v163, 8.507059e+37
    %v165 = vand.u32 %v153, 2147483648
    %v166 = vor.u32 1.1754944e-38, %v165
    %v167 = vsel %vm164, %v166, %v162
    %v168 = vmul.f32 1.0, %v167
    %v169 = vtanh.pop %v149
    %v170 = vmul.f32 %v168, 0.0
    %172 = vrot.lane.b32.xlu0 %v169, 32
    %v173 = vpop.permute.xlu0 %172
    %v175 = vmul.f32 %v168, %v173
    %177 = vrot.lane.b32.xlu0 %v175, 32
    %v178 = vpop.permute.xlu0 %177
    %v180 = vadd.f32 %v170, %v178
    %v181 = vtanh.pop %v180
    %183 = vrot.lane.b32.xlu0 %v181, 32
    %v184 = vpop.permute.xlu0 %183
    %v186 = vmul.f32 %v168, %v184
    %188 = vrot.lane.b32.xlu0 %v186, 64
    %v189 = vpop.permute.xlu0 %188
    %v190 = vsel %vm125, %v189, 0
    %192 = vmatpush.msra.mxu0 0.0
    %193 = vmatpush.msra.mxu0 0.0
    %194 = vmatpush.msra.mxu0 0.0
    %195 = vmatpush.msra.mxu0 0.0
    %196 = vmatpush.msra.mxu0 0.0
    %197 = vmatpush.msra.mxu0 0.0
    %198 = vmatpush.msra.mxu0 0.0
    %199 = vmatpush.msra.mxu0 0.0
    %200 = vmatpush.msra.mxu0 0.0
    %201 = vmatpush.msra.mxu0 0.0
    %202 = vmatpush.msra.mxu0 0.0
    %203 = vmatpush.msra.mxu0 0.0
    %204 = vmatpush.msra.mxu0 %v90
    %205 = vmatpush.msra.mxu0 %v89
    %206 = vmatpush.msra.mxu0 %v88
    %207 = vmatpush.msra.mxu0 %v87
    %208 = vmatmul.f32.gmra.mxu0 %v190
    %v209 = vpop.f32.mrf.mxu0
    %v210 = vadd.f32 0.0, %v209
    %211 = vdwg.mxu0
    %v213 = vrot.slane %v210, 6
    %v215 = vadd.f32 %v120, %v213
    %v216 = vxor.u32 %v215, 2147483648
    %v217 = vmul.f32 %v216, 1.442695
    %v218 = vpow.pop %v217
    %v219 = vadd.f32 %v218, 1.0
    %v220 = vrcp.pop %v219
    %v221 = vmul.f32 %v219, %v220
    %v222 = vsub.f32 1.0, %v221
    %v223 = vmul.f32 %v220, %v222
    %v224 = vadd.f32 %v220, %v223
    %vm225 = vweird.f32 %v219
    %vm226 = vweird.f32 %v220
    %vm227 = vmor %vm225, %vm226
    %v228 = vsel %vm227, %v220, %v224
    %v229 = vand.u32 2147483647, %v219
    %vm230 = vcmp.eq.f32.partialorder %v229, 8.507059e+37
    %v231 = vand.u32 %v219, 2147483648
    %v232 = vor.u32 1.1754944e-38, %v231
    %v233 = vsel %vm230, %v232, %v228
    %v234 = vmul.f32 1.0, %v233
    %v235 = vtanh.pop %v215
    %v237 = vrot.slane %v180, 6
    %v239 = vmul.f32 %v234, %v237
    %241 = vrot.lane.b32.xlu0 %v235, 32
    %v242 = vpop.permute.xlu0 %241
    %v244 = vmul.f32 %v234, %v242
    %246 = vrot.lane.b32.xlu0 %v244, 32
    %v247 = vpop.permute.xlu0 %246
    %v249 = vadd.f32 %v239, %v247
    %v250 = vtanh.pop %v249
    %252 = vrot.lane.b32.xlu0 %v250, 32
    %v253 = vpop.permute.xlu0 %252
    %v255 = vmul.f32 %v234, %v253
    %v257 = vrot.slane %v255, 2
    %258 = vrot.lane.b32.xlu0 %v257, 64
    %v259 = vpop.permute.xlu0 %258
    %v260 = vsel %vm125, %v259, 0
    %262 = vmatpush.msra.mxu0 0.0
    %263 = vmatpush.msra.mxu0 0.0
    %264 = vmatpush.msra.mxu0 0.0
    %265 = vmatpush.msra.mxu0 0.0
    %266 = vmatpush.msra.mxu0 0.0
    %267 = vmatpush.msra.mxu0 0.0
    %268 = vmatpush.msra.mxu0 0.0
    %269 = vmatpush.msra.mxu0 0.0
    %270 = vmatpush.msra.mxu0 0.0
    %271 = vmatpush.msra.mxu0 0.0
    %272 = vmatpush.msra.mxu0 0.0
    %273 = vmatpush.msra.mxu0 0.0
    %274 = vmatpush.msra.mxu0 %v90
    %275 = vmatpush.msra.mxu0 %v89
    %276 = vmatpush.msra.mxu0 %v88
    %277 = vmatpush.msra.mxu0 %v87
    %278 = vmatmul.f32.gmra.mxu0 %v260
    %v279 = vpop.f32.mrf.mxu0
    %v280 = vadd.f32 0.0, %v279
    %281 = vdwg.mxu0
    %v283 = vrot.slane %v280, 4
    %v285 = vadd.f32 %v120, %v283
    %v286 = vxor.u32 %v285, 2147483648
    %v287 = vmul.f32 %v286, 1.442695
    %v288 = vpow.pop %v287
    %v289 = vadd.f32 %v288, 1.0
    %v290 = vrcp.pop %v289
    %v291 = vmul.f32 %v289, %v290
    %v292 = vsub.f32 1.0, %v291
    %v293 = vmul.f32 %v290, %v292
    %v294 = vadd.f32 %v290, %v293
    %vm295 = vweird.f32 %v289
    %vm296 = vweird.f32 %v290
    %vm297 = vmor %vm295, %vm296
    %v298 = vsel %vm297, %v290, %v294
    %v299 = vand.u32 2147483647, %v289
    %vm300 = vcmp.eq.f32.partialorder %v299, 8.507059e+37
    %v301 = vand.u32 %v289, 2147483648
    %v302 = vor.u32 1.1754944e-38, %v301
    %v303 = vsel %vm300, %v302, %v298
    %v304 = vmul.f32 1.0, %v303
    %v305 = vtanh.pop %v285
    %v307 = vrot.slane %v249, 6
    %v309 = vmul.f32 %v304, %v307
    %311 = vrot.lane.b32.xlu0 %v305, 32
    %v312 = vpop.permute.xlu0 %311
    %v314 = vmul.f32 %v304, %v312
    %316 = vrot.lane.b32.xlu0 %v314, 32
    %v317 = vpop.permute.xlu0 %316
    %v319 = vadd.f32 %v309, %v317
    %v320 = vtanh.pop %v319
    %322 = vrot.lane.b32.xlu0 %v320, 32
    %v323 = vpop.permute.xlu0 %322
    %v325 = vmul.f32 %v304, %v323
    %v327 = vrot.slane %v325, 4
    %328 = vrot.lane.b32.xlu0 %v327, 64
    %v329 = vpop.permute.xlu0 %328
    %v330 = vsel %vm125, %v329, 0
    %332 = vmatpush.msra.mxu0 0.0
    %333 = vmatpush.msra.mxu0 0.0
    %334 = vmatpush.msra.mxu0 0.0
    %335 = vmatpush.msra.mxu0 0.0
    %336 = vmatpush.msra.mxu0 0.0
    %337 = vmatpush.msra.mxu0 0.0
    %338 = vmatpush.msra.mxu0 0.0
    %339 = vmatpush.msra.mxu0 0.0
    %340 = vmatpush.msra.mxu0 0.0
    %341 = vmatpush.msra.mxu0 0.0
    %342 = vmatpush.msra.mxu0 0.0
    %343 = vmatpush.msra.mxu0 0.0
    %344 = vmatpush.msra.mxu0 %v90
    %345 = vmatpush.msra.mxu0 %v89
    %346 = vmatpush.msra.mxu0 %v88
    %347 = vmatpush.msra.mxu0 %v87
    %348 = vmatmul.f32.gmra.mxu0 %v330
    %v349 = vpop.f32.mrf.mxu0
    %v350 = vadd.f32 0.0, %v349
    %351 = vdwg.mxu0
    %v353 = vrot.slane %v350, 2
    %v355 = vadd.f32 %v120, %v353
    %v356 = vxor.u32 %v355, 2147483648
    %v357 = vmul.f32 %v356, 1.442695
    %v358 = vpow.pop %v357
    %v359 = vadd.f32 %v358, 1.0
    %v360 = vrcp.pop %v359
    %v361 = vmul.f32 %v359, %v360
    %v362 = vsub.f32 1.0, %v361
    %v363 = vmul.f32 %v360, %v362
    %v364 = vadd.f32 %v360, %v363
    %vm365 = vweird.f32 %v359
    %vm366 = vweird.f32 %v360
    %vm367 = vmor %vm365, %vm366
    %v368 = vsel %vm367, %v360, %v364
    %v369 = vand.u32 2147483647, %v359
    %vm370 = vcmp.eq.f32.partialorder %v369, 8.507059e+37
    %v371 = vand.u32 %v359, 2147483648
    %v372 = vor.u32 1.1754944e-38, %v371
    %v373 = vsel %vm370, %v372, %v368
    %v374 = vmul.f32 1.0, %v373
    %v375 = vtanh.pop %v355
    %v377 = vrot.slane %v319, 6
    %v379 = vmul.f32 %v374, %v377
    %381 = vrot.lane.b32.xlu0 %v375, 32
    %v382 = vpop.permute.xlu0 %381
    %v384 = vmul.f32 %v374, %v382
    %386 = vrot.lane.b32.xlu0 %v384, 32
    %v387 = vpop.permute.xlu0 %386
    %v389 = vadd.f32 %v379, %v387
    %v390 = vtanh.pop %v389
    %392 = vrot.lane.b32.xlu0 %v390, 32
    %v393 = vpop.permute.xlu0 %392
    %v395 = vmul.f32 %v374, %v393
    %v397 = vrot.slane %v395, 6
    %398 = vrot.lane.b32.xlu0 %v397, 64
    %v399 = vpop.permute.xlu0 %398
    %v400 = vsel %vm125, %v399, 0
    %402 = vmatpush.msra.mxu0 0.0
    %403 = vmatpush.msra.mxu0 0.0
    %404 = vmatpush.msra.mxu0 0.0
    %405 = vmatpush.msra.mxu0 0.0
    %406 = vmatpush.msra.mxu0 0.0
    %407 = vmatpush.msra.mxu0 0.0
    %408 = vmatpush.msra.mxu0 0.0
    %409 = vmatpush.msra.mxu0 0.0
    %410 = vmatpush.msra.mxu0 0.0
    %411 = vmatpush.msra.mxu0 0.0
    %412 = vmatpush.msra.mxu0 0.0
    %413 = vmatpush.msra.mxu0 0.0
    %414 = vmatpush.msra.mxu0 %v90
    %415 = vmatpush.msra.mxu0 %v89
    %416 = vmatpush.msra.mxu0 %v88
    %417 = vmatpush.msra.mxu0 %v87
    %418 = vmatmul.f32.gmra.mxu0 %v400
    %v419 = vpop.f32.mrf.mxu0
    %v420 = vadd.f32 0.0, %v419
    %421 = vdwg.mxu0
    %v422 = vadd.f32 %v123, %v420
    %v423 = vxor.u32 %v422, 2147483648
    %v424 = vmul.f32 %v423, 1.442695
    %v425 = vpow.pop %v424
    %v426 = vadd.f32 %v425, 1.0
    %v427 = vrcp.pop %v426
    %v428 = vmul.f32 %v426, %v427
    %v429 = vsub.f32 1.0, %v428
    %v430 = vmul.f32 %v427, %v429
    %v431 = vadd.f32 %v427, %v430
    %vm432 = vweird.f32 %v426
    %vm433 = vweird.f32 %v427
    %vm434 = vmor %vm432, %vm433
    %v435 = vsel %vm434, %v427, %v431
    %v436 = vand.u32 2147483647, %v426
    %vm437 = vcmp.eq.f32.partialorder %v436, 8.507059e+37
    %v438 = vand.u32 %v426, 2147483648
    %v439 = vor.u32 1.1754944e-38, %v438
    %v440 = vsel %vm437, %v439, %v435
    %v441 = vmul.f32 1.0, %v440
    %v442 = vtanh.pop %v422
    %v444 = vrot.slane %v389, 6
    %v446 = vmul.f32 %v441, %v444
    %448 = vrot.lane.b32.xlu0 %v442, 32
    %v449 = vpop.permute.xlu0 %448
    %v451 = vmul.f32 %v441, %v449
    %453 = vrot.lane.b32.xlu0 %v451, 32
    %v454 = vpop.permute.xlu0 %453
    %v456 = vadd.f32 %v446, %v454
    %v457 = vtanh.pop %v456
    %459 = vrot.lane.b32.xlu0 %v457, 32
    %v460 = vpop.permute.xlu0 %459
    %v462 = vmul.f32 %v441, %v460
    %464 = vrot.lane.b32.xlu0 %v462, 64
    %v465 = vpop.permute.xlu0 %464
    %v466 = vsel %vm125, %v465, 0
    %468 = vmatpush.msra.mxu0 0.0
    %469 = vmatpush.msra.mxu0 0.0
    %470 = vmatpush.msra.mxu0 0.0
    %471 = vmatpush.msra.mxu0 0.0
    %472 = vmatpush.msra.mxu0 0.0
    %473 = vmatpush.msra.mxu0 0.0
    %474 = vmatpush.msra.mxu0 0.0
    %475 = vmatpush.msra.mxu0 0.0
    %476 = vmatpush.msra.mxu0 0.0
    %477 = vmatpush.msra.mxu0 0.0
    %478 = vmatpush.msra.mxu0 0.0
    %479 = vmatpush.msra.mxu0 0.0
    %480 = vmatpush.msra.mxu0 %v90
    %481 = vmatpush.msra.mxu0 %v89
    %482 = vmatpush.msra.mxu0 %v88
    %483 = vmatpush.msra.mxu0 %v87
    %484 = vmatmul.f32.gmra.mxu0 %v466
    %v485 = vpop.f32.mrf.mxu0
    %v486 = vadd.f32 0.0, %v485
    %487 = vdwg.mxu0
    %v489 = vrot.slane %v486, 6
    %v491 = vadd.f32 %v123, %v489
    %v492 = vxor.u32 %v491, 2147483648
    %v493 = vmul.f32 %v492, 1.442695
    %v494 = vpow.pop %v493
    %v495 = vadd.f32 %v494, 1.0
    %v496 = vrcp.pop %v495
    %v497 = vmul.f32 %v495, %v496
    %v498 = vsub.f32 1.0, %v497
    %v499 = vmul.f32 %v496, %v498
    %v500 = vadd.f32 %v496, %v499
    %vm501 = vweird.f32 %v495
    %vm502 = vweird.f32 %v496
    %vm503 = vmor %vm501, %vm502
    %v504 = vsel %vm503, %v496, %v500
    %v505 = vand.u32 2147483647, %v495
    %vm506 = vcmp.eq.f32.partialorder %v505, 8.507059e+37
    %v507 = vand.u32 %v495, 2147483648
    %v508 = vor.u32 1.1754944e-38, %v507
    %v509 = vsel %vm506, %v508, %v504
    %v510 = vmul.f32 1.0, %v509
    %v511 = vtanh.pop %v491
    %v513 = vrot.slane %v456, 6
    %v515 = vmul.f32 %v510, %v513
    %517 = vrot.lane.b32.xlu0 %v511, 32
    %v518 = vpop.permute.xlu0 %517
    %v520 = vmul.f32 %v510, %v518
    %522 = vrot.lane.b32.xlu0 %v520, 32
    %v523 = vpop.permute.xlu0 %522
    %v525 = vadd.f32 %v515, %v523
    %v526 = vtanh.pop %v525
    %528 = vrot.lane.b32.xlu0 %v526, 32
    %v529 = vpop.permute.xlu0 %528
    %v531 = vmul.f32 %v510, %v529
    %v533 = vrot.slane %v531, 2
    %534 = vrot.lane.b32.xlu0 %v533, 64
    %v535 = vpop.permute.xlu0 %534
    %v536 = vsel %vm125, %v535, 0
    %538 = vmatpush.msra.mxu0 0.0
    %539 = vmatpush.msra.mxu0 0.0
    %540 = vmatpush.msra.mxu0 0.0
    %541 = vmatpush.msra.mxu0 0.0
    %542 = vmatpush.msra.mxu0 0.0
    %543 = vmatpush.msra.mxu0 0.0
    %544 = vmatpush.msra.mxu0 0.0
    %545 = vmatpush.msra.mxu0 0.0
    %546 = vmatpush.msra.mxu0 0.0
    %547 = vmatpush.msra.mxu0 0.0
    %548 = vmatpush.msra.mxu0 0.0
    %549 = vmatpush.msra.mxu0 0.0
    %550 = vmatpush.msra.mxu0 %v90
    %551 = vmatpush.msra.mxu0 %v89
    %552 = vmatpush.msra.mxu0 %v88
    %553 = vmatpush.msra.mxu0 %v87
    %554 = vmatmul.f32.gmra.mxu0 %v536
    %v555 = vpop.f32.mrf.mxu0
    %v556 = vadd.f32 0.0, %v555
    %557 = vdwg.mxu0
    %v559 = vrot.slane %v556, 4
    %v561 = vadd.f32 %v123, %v559
    %v562 = vxor.u32 %v561, 2147483648
    %v563 = vmul.f32 %v562, 1.442695
    %v564 = vpow.pop %v563
    %v565 = vadd.f32 %v564, 1.0
    %v566 = vrcp.pop %v565
    %v567 = vmul.f32 %v565, %v566
    %v568 = vsub.f32 1.0, %v567
    %v569 = vmul.f32 %v566, %v568
    %v570 = vadd.f32 %v566, %v569
    %vm571 = vweird.f32 %v565
    %vm572 = vweird.f32 %v566
    %vm573 = vmor %vm571, %vm572
    %v574 = vsel %vm573, %v566, %v570
    %v575 = vand.u32 2147483647, %v565
    %vm576 = vcmp.eq.f32.partialorder %v575, 8.507059e+37
    %v577 = vand.u32 %v565, 2147483648
    %v578 = vor.u32 1.1754944e-38, %v577
    %v579 = vsel %vm576, %v578, %v574
    %v580 = vmul.f32 1.0, %v579
    %v581 = vtanh.pop %v561
    %v583 = vrot.slane %v525, 6
    %v585 = vmul.f32 %v580, %v583
    %587 = vrot.lane.b32.xlu0 %v581, 32
    %v588 = vpop.permute.xlu0 %587
    %v590 = vmul.f32 %v580, %v588
    %592 = vrot.lane.b32.xlu0 %v590, 32
    %v593 = vpop.permute.xlu0 %592
    %v595 = vadd.f32 %v585, %v593
    %v596 = vtanh.pop %v595
    %598 = vrot.lane.b32.xlu0 %v596, 32
    %v599 = vpop.permute.xlu0 %598
    %v601 = vmul.f32 %v580, %v599
    %v603 = vrot.slane %v601, 4
    %604 = vrot.lane.b32.xlu0 %v603, 64
    %v605 = vpop.permute.xlu0 %604
    %v606 = vsel %vm125, %v605, 0
    %608 = vmatpush.msra.mxu0 0.0
    %609 = vmatpush.msra.mxu0 0.0
    %610 = vmatpush.msra.mxu0 0.0
    %611 = vmatpush.msra.mxu0 0.0
    %612 = vmatpush.msra.mxu0 0.0
    %613 = vmatpush.msra.mxu0 0.0
    %614 = vmatpush.msra.mxu0 0.0
    %615 = vmatpush.msra.mxu0 0.0
    %616 = vmatpush.msra.mxu0 0.0
    %617 = vmatpush.msra.mxu0 0.0
    %618 = vmatpush.msra.mxu0 0.0
    %619 = vmatpush.msra.mxu0 0.0
    %620 = vmatpush.msra.mxu0 %v90
    %621 = vmatpush.msra.mxu0 %v89
    %622 = vmatpush.msra.mxu0 %v88
    %623 = vmatpush.msra.mxu0 %v87
    %624 = vmatmul.f32.gmra.mxu0 %v606
    %v625 = vpop.f32.mrf.mxu0
    %v626 = vadd.f32 0.0, %v625
    %627 = vdwg.mxu0
    %v629 = vrot.slane %v626, 2
    %v631 = vadd.f32 %v123, %v629
    %v632 = vxor.u32 %v631, 2147483648
    %v633 = vmul.f32 %v632, 1.442695
    %v634 = vpow.pop %v633
    %v635 = vadd.f32 %v634, 1.0
    %v636 = vrcp.pop %v635
    %v637 = vmul.f32 %v635, %v636
    %v638 = vsub.f32 1.0, %v637
    %v639 = vmul.f32 %v636, %v638
    %v640 = vadd.f32 %v636, %v639
    %vm641 = vweird.f32 %v635
    %vm642 = vweird.f32 %v636
    %vm643 = vmor %vm641, %vm642
    %v644 = vsel %vm643, %v636, %v640
    %v645 = vand.u32 2147483647, %v635
    %vm646 = vcmp.eq.f32.partialorder %v645, 8.507059e+37
    %v647 = vand.u32 %v635, 2147483648
    %v648 = vor.u32 1.1754944e-38, %v647
    %v649 = vsel %vm646, %v648, %v644
    %v650 = vmul.f32 1.0, %v649
    %v651 = vtanh.pop %v631
    %v653 = vrot.slane %v595, 6
    %v655 = vmul.f32 %v650, %v653
    %657 = vrot.lane.b32.xlu0 %v651, 32
    %v658 = vpop.permute.xlu0 %657
    %v660 = vmul.f32 %v650, %v658
    %662 = vrot.lane.b32.xlu0 %v660, 32
    %v663 = vpop.permute.xlu0 %662
    %v665 = vadd.f32 %v655, %v663
    %v666 = vtanh.pop %v665
    %668 = vrot.lane.b32.xlu0 %v666, 32
    %v669 = vpop.permute.xlu0 %668
    %v671 = vmul.f32 %v650, %v669
    %v672 = vld [vmem:[#allocation7] sm:$0xff]
    %v673 = vld [vmem:[#allocation7 + $0x8] sm:$0xff]
    %v674 = vld [vmem:[#allocation7 + $0x10] sm:$0xff]
    %v675 = vld [vmem:[#allocation7 + $0x18] sm:$0xff]
    %v676 = vld [vmem:[#allocation8] sm:$0x1]
    %v677 = vperm.slane %v676, 0
    %v679 = vrot.slane %v671, 6
    %680 = vrot.lane.b32.xlu0 %v679, 64
    %v681 = vpop.permute.xlu0 %680
    %v682 = vsel %vm125, %v681, 0
    %684 = vmatpush.msra.mxu0 0.0
    %685 = vmatpush.msra.mxu0 0.0
    %686 = vmatpush.msra.mxu0 0.0
    %687 = vmatpush.msra.mxu0 0.0
    %688 = vmatpush.msra.mxu0 0.0
    %689 = vmatpush.msra.mxu0 0.0
    %690 = vmatpush.msra.mxu0 0.0
    %691 = vmatpush.msra.mxu0 0.0
    %692 = vmatpush.msra.mxu0 0.0
    %693 = vmatpush.msra.mxu0 0.0
    %694 = vmatpush.msra.mxu0 0.0
    %695 = vmatpush.msra.mxu0 0.0
    %696 = vmatpush.msra.mxu0 %v675
    %697 = vmatpush.msra.mxu0 %v674
    %698 = vmatpush.msra.mxu0 %v673
    %699 = vmatpush.msra.mxu0 %v672
    %700 = vmatmul.f32.gmra.mxu0 %v682
    %v701 = vpop.f32.mrf.mxu0
    %v702 = vadd.f32 %v677, %v701
    %703 = vdwg.mxu0
    %v704 = vmul.f32 %v702, 0.5
    %v705 = vrcp.pop 1.4142135
    %v706 = vmul.f32 1.4142135, %v705
    %v707 = vsub.f32 1.0, %v706
    %v708 = vmul.f32 %v705, %v707
    %v709 = vadd.f32 %v705, %v708
    %vm710 = vweird.f32 %v705
    %v711 = vsel %vm710, %v705, %v709
    %v712 = vmul.f32 %v702, %v711
    %v713 = vmul.f32 %v712, %v712
    %v714 = vmin.f32 16.0, %v713
    %v715 = vmul.f32 %v714, 2.1237322e-06
    %v716 = vadd.f32 %v715, 0.00028619796
    %v717 = vmul.f32 %v714, %v716
    %v718 = vadd.f32 %v717, 0.0036580483
    %v719 = vmul.f32 %v714, %v718
    %v720 = vadd.f32 %v719, 0.05243302
    %v721 = vmul.f32 %v714, %v720
    %v722 = vadd.f32 %v721, 0.18741608
    %v723 = vmul.f32 %v714, %v722
    %v724 = vadd.f32 %v723, 1.1283791
    %v725 = vmul.f32 %v712, %v724
    %v726 = vmul.f32 %v714, 3.8918573e-05
    %v727 = vadd.f32 %v726, 0.001143296
    %v728 = vmul.f32 %v714, %v727
    %v729 = vadd.f32 %v728, 0.014752088
    %v730 = vmul.f32 %v714, %v729
    %v731 = vadd.f32 %v730, 0.112945676
    %v732 = vmul.f32 %v714, %v731
    %v733 = vadd.f32 %v732, 0.4994258
    %v734 = vmul.f32 %v714, %v733
    %v735 = vadd.f32 %v734, 1.0
    %v736 = vrcp.pop %v735
    %v737 = vmul.f32 %v735, %v736
    %v738 = vsub.f32 1.0, %v737
    %v739 = vmul.f32 %v736, %v738
    %v740 = vadd.f32 %v736, %v739
    %vm741 = vweird.f32 %v735
    %vm742 = vweird.f32 %v736
    %vm743 = vmor %vm741, %vm742
    %v744 = vsel %vm743, %v736, %v740
    %v745 = vand.u32 2147483647, %v735
    %vm746 = vcmp.eq.f32.partialorder %v745, 8.507059e+37
    %v747 = vand.u32 %v735, 2147483648
    %v748 = vor.u32 1.1754944e-38, %v747
    %v749 = vsel %vm746, %v748, %v744
    %v750 = vmul.f32 %v725, %v749
    %v751 = vmin.f32 %v750, 1.0
    %v752 = vmax.f32 %v751, -1.0
    %v753 = vadd.f32 %v752, 1.0
    %v754 = vmul.f32 %v704, %v753
    %v755 = vadd.f32 %v754, 0.0
    %v756 = vld [vmem:[#allocation8 + $0x1] sm:$0x1]
    %v757 = vperm.slane %v756, 0
    %762 = vrot.lane.b32.xlu0 %v672, 96
    %v763 = vpop.permute.xlu0 %762
    %764 = vrot.lane.b32.xlu0 %v673, 96
    %v765 = vpop.permute.xlu0 %764
    %766 = vrot.lane.b32.xlu0 %v674, 96
    %v767 = vpop.permute.xlu0 %766
    %768 = vrot.lane.b32.xlu0 %v675, 96
    %v769 = vpop.permute.xlu0 %768
    %v775 = vsel %vm125, %v754, 0
    %777 = vmatpush.msra.mxu0 0.0
    %778 = vmatpush.msra.mxu0 0.0
    %779 = vmatpush.msra.mxu0 0.0
    %780 = vmatpush.msra.mxu0 0.0
    %781 = vmatpush.msra.mxu0 0.0
    %782 = vmatpush.msra.mxu0 0.0
    %783 = vmatpush.msra.mxu0 0.0
    %784 = vmatpush.msra.mxu0 0.0
    %785 = vmatpush.msra.mxu0 0.0
    %786 = vmatpush.msra.mxu0 0.0
    %787 = vmatpush.msra.mxu0 0.0
    %788 = vmatpush.msra.mxu0 0.0
    %789 = vmatpush.msra.mxu0 %v769
    %790 = vmatpush.msra.mxu0 %v767
    %791 = vmatpush.msra.mxu0 %v765
    %792 = vmatpush.msra.mxu0 %v763
    %793 = vmatmul.f32.gmra.mxu0 %v775
    %v794 = vpop.f32.mrf.mxu0
    %v795 = vadd.f32 %v757, %v794
    %796 = vdwg.mxu0
    %v797 = vmul.f32 %v795, 0.5
    %v798 = vmul.f32 %v795, %v711
    %v799 = vmul.f32 %v798, %v798
    %v800 = vmin.f32 16.0, %v799
    %v801 = vmul.f32 %v800, 2.1237322e-06
    %v802 = vadd.f32 %v801, 0.00028619796
    %v803 = vmul.f32 %v800, %v802
    %v804 = vadd.f32 %v803, 0.0036580483
    %v805 = vmul.f32 %v800, %v804
    %v806 = vadd.f32 %v805, 0.05243302
    %v807 = vmul.f32 %v800, %v806
    %v808 = vadd.f32 %v807, 0.18741608
    %v809 = vmul.f32 %v800, %v808
    %v810 = vadd.f32 %v809, 1.1283791
    %v811 = vmul.f32 %v798, %v810
    %v812 = vmul.f32 %v800, 3.8918573e-05
    %v813 = vadd.f32 %v812, 0.001143296
    %v814 = vmul.f32 %v800, %v813
    %v815 = vadd.f32 %v814, 0.014752088
    %v816 = vmul.f32 %v800, %v815
    %v817 = vadd.f32 %v816, 0.112945676
    %v818 = vmul.f32 %v800, %v817
    %v819 = vadd.f32 %v818, 0.4994258
    %v820 = vmul.f32 %v800, %v819
    %v821 = vadd.f32 %v820, 1.0
    %v822 = vrcp.pop %v821
    %v823 = vmul.f32 %v821, %v822
    %v824 = vsub.f32 1.0, %v823
    %v825 = vmul.f32 %v822, %v824
    %v826 = vadd.f32 %v822, %v825
    %vm827 = vweird.f32 %v821
    %vm828 = vweird.f32 %v822
    %vm829 = vmor %vm827, %vm828
    %v830 = vsel %vm829, %v822, %v826
    %v831 = vand.u32 2147483647, %v821
    %vm832 = vcmp.eq.f32.partialorder %v831, 8.507059e+37
    %v833 = vand.u32 %v821, 2147483648
    %v834 = vor.u32 1.1754944e-38, %v833
    %v835 = vsel %vm832, %v834, %v830
    %v836 = vmul.f32 %v811, %v835
    %v837 = vmin.f32 %v836, 1.0
    %v838 = vmax.f32 %v837, -1.0
    %v839 = vadd.f32 %v838, 1.0
    %v840 = vmul.f32 %v797, %v839
    %v841 = vadd.f32 %v755, %v840
    %v842 = vld [vmem:[#allocation8 + $0x2] sm:$0x1]
    %v843 = vperm.slane %v842, 0
    %844 = vrot.lane.b32.xlu0 %v672, 64
    %v845 = vpop.permute.xlu0 %844
    %846 = vrot.lane.b32.xlu0 %v673, 64
    %v847 = vpop.permute.xlu0 %846
    %848 = vrot.lane.b32.xlu0 %v674, 64
    %v849 = vpop.permute.xlu0 %848
    %850 = vrot.lane.b32.xlu0 %v675, 64
    %v851 = vpop.permute.xlu0 %850
    %v857 = vsel %vm125, %v840, 0
    %859 = vmatpush.msra.mxu0 0.0
    %860 = vmatpush.msra.mxu0 0.0
    %861 = vmatpush.msra.mxu0 0.0
    %862 = vmatpush.msra.mxu0 0.0
    %863 = vmatpush.msra.mxu0 0.0
    %864 = vmatpush.msra.mxu0 0.0
    %865 = vmatpush.msra.mxu0 0.0
    %866 = vmatpush.msra.mxu0 0.0
    %867 = vmatpush.msra.mxu0 0.0
    %868 = vmatpush.msra.mxu0 0.0
    %869 = vmatpush.msra.mxu0 0.0
    %870 = vmatpush.msra.mxu0 0.0
    %871 = vmatpush.msra.mxu0 %v851
    %872 = vmatpush.msra.mxu0 %v849
    %873 = vmatpush.msra.mxu0 %v847
    %874 = vmatpush.msra.mxu0 %v845
    %875 = vmatmul.f32.gmra.mxu0 %v857
    %v876 = vpop.f32.mrf.mxu0
    %v877 = vadd.f32 %v843, %v876
    %878 = vdwg.mxu0
    %v879 = vmul.f32 %v877, 0.5
    %v880 = vmul.f32 %v877, %v711
    %v881 = vmul.f32 %v880, %v880
    %v882 = vmin.f32 16.0, %v881
    %v883 = vmul.f32 %v882, 2.1237322e-06
    %v884 = vadd.f32 %v883, 0.00028619796
    %v885 = vmul.f32 %v882, %v884
    %v886 = vadd.f32 %v885, 0.0036580483
    %v887 = vmul.f32 %v882, %v886
    %v888 = vadd.f32 %v887, 0.05243302
    %v889 = vmul.f32 %v882, %v888
    %v890 = vadd.f32 %v889, 0.18741608
    %v891 = vmul.f32 %v882, %v890
    %v892 = vadd.f32 %v891, 1.1283791
    %v893 = vmul.f32 %v880, %v892
    %v894 = vmul.f32 %v882, 3.8918573e-05
    %v895 = vadd.f32 %v894, 0.001143296
    %v896 = vmul.f32 %v882, %v895
    %v897 = vadd.f32 %v896, 0.014752088
    %v898 = vmul.f32 %v882, %v897
    %v899 = vadd.f32 %v898, 0.112945676
    %v900 = vmul.f32 %v882, %v899
    %v901 = vadd.f32 %v900, 0.4994258
    %v902 = vmul.f32 %v882, %v901
    %v903 = vadd.f32 %v902, 1.0
    %v904 = vrcp.pop %v903
    %v905 = vmul.f32 %v903, %v904
    %v906 = vsub.f32 1.0, %v905
    %v907 = vmul.f32 %v904, %v906
    %v908 = vadd.f32 %v904, %v907
    %vm909 = vweird.f32 %v903
    %vm910 = vweird.f32 %v904
    %vm911 = vmor %vm909, %vm910
    %v912 = vsel %vm911, %v904, %v908
    %v913 = vand.u32 2147483647, %v903
    %vm914 = vcmp.eq.f32.partialorder %v913, 8.507059e+37
    %v915 = vand.u32 %v903, 2147483648
    %v916 = vor.u32 1.1754944e-38, %v915
    %v917 = vsel %vm914, %v916, %v912
    %v918 = vmul.f32 %v893, %v917
    %v919 = vmin.f32 %v918, 1.0
    %v920 = vmax.f32 %v919, -1.0
    %v921 = vadd.f32 %v920, 1.0
    %v922 = vmul.f32 %v879, %v921
    %v923 = vadd.f32 %v841, %v922
    %v924 = vld [vmem:[#allocation8 + $0x3] sm:$0x1]
    %v925 = vperm.slane %v924, 0
    %926 = vrot.lane.b32.xlu0 %v672, 32
    %v927 = vpop.permute.xlu0 %926
    %928 = vrot.lane.b32.xlu0 %v673, 32
    %v929 = vpop.permute.xlu0 %928
    %930 = vrot.lane.b32.xlu0 %v674, 32
    %v931 = vpop.permute.xlu0 %930
    %932 = vrot.lane.b32.xlu0 %v675, 32
    %v933 = vpop.permute.xlu0 %932
    %v939 = vsel %vm125, %v923, 0
    %941 = vmatpush.msra.mxu0 0.0
    %942 = vmatpush.msra.mxu0 0.0
    %943 = vmatpush.msra.mxu0 0.0
    %944 = vmatpush.msra.mxu0 0.0
    %945 = vmatpush.msra.mxu0 0.0
    %946 = vmatpush.msra.mxu0 0.0
    %947 = vmatpush.msra.mxu0 0.0
    %948 = vmatpush.msra.mxu0 0.0
    %949 = vmatpush.msra.mxu0 0.0
    %950 = vmatpush.msra.mxu0 0.0
    %951 = vmatpush.msra.mxu0 0.0
    %952 = vmatpush.msra.mxu0 0.0
    %953 = vmatpush.msra.mxu0 %v933
    %954 = vmatpush.msra.mxu0 %v931
    %955 = vmatpush.msra.mxu0 %v929
    %956 = vmatpush.msra.mxu0 %v927
    %957 = vmatmul.f32.gmra.mxu0 %v939
    %v958 = vpop.f32.mrf.mxu0
    %v959 = vadd.f32 %v925, %v958
    %960 = vdwg.mxu0
    %vm961 = vcmask 254976
    %v962 = vsel %vm961, %v959, 0.0
    %963 = vadd.xlane.f32.xlu0 %v962
    %v964 = vpop.xlane.xlu0 %963
    %v965 = vrcp.pop 32.0
    %v966 = vmul.f32 32.0, %v965
    %v967 = vsub.f32 1.0, %v966
    %v968 = vmul.f32 %v965, %v967
    %v969 = vadd.f32 %v965, %v968
    %vm970 = vweird.f32 %v965
    %v971 = vsel %vm970, %v965, %v969
    %v972 = vmul.f32 %v964, %v971
    %v973 = vsub.f32 %v959, %v972
    %v974 = vmul.f32 %v973, %v973
    %v975 = vsel %vm961, %v974, 0.0
    %976 = vadd.xlane.f32.xlu0 %v975
    %v977 = vpop.xlane.xlu0 %976
    %v978 = vmul.f32 %v977, %v971
    %v979 = vadd.f32 %v978, 1e-05
    %v980 = vrsqrt.pop %v979
    %v981 = vmul.f32 %v980, %v979
    %v982 = vmul.f32 %v981, %v980
    %v983 = vmul.f32 0.5, %v982
    %v984 = vsub.f32 1.5, %v983
    %v985 = vmul.f32 %v980, %v984
    %vm986 = vweird.f32 %v979
    %vm987 = vweird.f32 %v980
    %vm988 = vmor %vm986, %vm987
    %v989 = vsel %vm988, %v980, %v985
    %v990 = vmul.f32 %v973, %v989
    %v991 = vld [vmem:[#allocation8 + $0x4] sm:$0x1]
    %v992 = vperm.slane %v991, 0
    %v993 = vmul.f32 %v990, %v992
    %v994 = vld [vmem:[#allocation8 + $0x5] sm:$0x1]
    %v995 = vperm.slane %v994, 0
    %v996 = vadd.f32 %v993, %v995
    %v997 = vmul.f32 %v996, 0.5
    %v998 = vmul.f32 %v996, %v711
    %v999 = vmul.f32 %v998, %v998
    %v1000 = vmin.f32 16.0, %v999
    %v1001 = vmul.f32 %v1000, 2.1237322e-06
    %v1002 = vadd.f32 %v1001, 0.00028619796
    %v1003 = vmul.f32 %v1000, %v1002
    %v1004 = vadd.f32 %v1003, 0.0036580483
    %v1005 = vmul.f32 %v1000, %v1004
    %v1006 = vadd.f32 %v1005, 0.05243302
    %v1007 = vmul.f32 %v1000, %v1006
    %v1008 = vadd.f32 %v1007, 0.18741608
    %v1009 = vmul.f32 %v1000, %v1008
    %v1010 = vadd.f32 %v1009, 1.1283791
    %v1011 = vmul.f32 %v998, %v1010
    %v1012 = vmul.f32 %v1000, 3.8918573e-05
    %v1013 = vadd.f32 %v1012, 0.001143296
    %v1014 = vmul.f32 %v1000, %v1013
    %v1015 = vadd.f32 %v1014, 0.014752088
    %v1016 = vmul.f32 %v1000, %v1015
    %v1017 = vadd.f32 %v1016, 0.112945676
    %v1018 = vmul.f32 %v1000, %v1017
    %v1019 = vadd.f32 %v1018, 0.4994258
    %v1020 = vmul.f32 %v1000, %v1019
    %v1021 = vadd.f32 %v1020, 1.0
    %v1022 = vrcp.pop %v1021
    %v1023 = vmul.f32 %v1021, %v1022
    %v1024 = vsub.f32 1.0, %v1023
    %v1025 = vmul.f32 %v1022, %v1024
    %v1026 = vadd.f32 %v1022, %v1025
    %vm1027 = vweird.f32 %v1021
    %vm1028 = vweird.f32 %v1022
    %vm1029 = vmor %vm1027, %vm1028
    %v1030 = vsel %vm1029, %v1022, %v1026
    %v1031 = vand.u32 2147483647, %v1021
    %vm1032 = vcmp.eq.f32.partialorder %v1031, 8.507059e+37
    %v1033 = vand.u32 %v1021, 2147483648
    %v1034 = vor.u32 1.1754944e-38, %v1033
    %v1035 = vsel %vm1032, %v1034, %v1030
    %v1036 = vmul.f32 %v1011, %v1035
    %v1037 = vmin.f32 %v1036, 1.0
    %v1038 = vmax.f32 %v1037, -1.0
    %v1039 = vadd.f32 %v1038, 1.0
    %v1040 = vmul.f32 %v997, %v1039
    %1041 = vst.msk [vmem:[#allocation10] sm:$0x3] %vm961, %v1040
    // Predicated region
    $region34: #{tpu_custom_call.1} parent=1 // pred_check
      _
    $region35: #{tpu_custom_call.1} parent=1 // pred_check_branch
      %1043 = sbr.rel (0) target = $region37
    $region36: #{tpu_custom_call.1} parent=1 // pred_region
      %1045 = vsyncadd [#allocation4], 0
      %s1047 = sshll.u32 [#allocation10], 4
      %s1048 = int_to_ptr.vmem [resolvable:$true] %s1047
      %s1049 = sshll.u32 %s4, 4
      %s1050 = int_to_ptr.hbm [resolvable:$true] %s1049
      %1052 = dma.vmem_to_hbm [thread:$0]  %s1048, 32, %s1050, [#allocation4]
    $region37: #{tpu_custom_call.1} parent=1 // pred_fallthru
      _
    // Predicated region
    $region38: #{tpu_custom_call.1} parent=1 // pred_check
      _
    $region39: #{tpu_custom_call.1} parent=1 // pred_check_branch
      %1054 = sbr.rel (0) target = $region41
    $region40: #{tpu_custom_call.1} parent=1 // pred_region
      %1056 = dma.done [#allocation4], 32
    $region41: #{tpu_custom_call.1} parent=1 // pred_fallthru
      _
    %1057 = vsyncpa [#allocation3], 1
    %1058 = vsyncpa [#allocation6], 1
    %1059 = vsyncpa [#allocation9], 1
    %1060 = vsyncpa [#allocation4], 1

</llo_original>
